<compile_context>
chip_gen: v5e
topology: v5e:2x2
jax: 0.10.0
libtpu: 0.0.40
codegen_flags: <defaults>
</compile_context>

<pallas_src>
import jax
import jax.numpy as jnp
from jax import lax
from jax.experimental import pallas as pl
from jax.experimental.pallas import tpu as pltpu

EPS = 1e-5

# (Cin, Cout, K, stride, pad, maxpool_after)
CONV_CFG = [
    (1, 16, 50, 3, 25, True),
    (16, 32, 20, 2, 10, True),
    (32, 64, 10, 1, 5, True),
    (64, 128, 5, 1, 2, False),
]


# --------------------------- static geometry ---------------------------------

def _round_up(x, m):
    return ((x + m - 1) // m) * m


def _conv_geometry(L):
    geom = []
    cur = L
    for li, (cin, cout, k, s, pad, pool) in enumerate(CONV_CFG):
        lin = cur                                  # (pooled) input length
        lp = lin + 2 * pad
        lout = (lp - k) // s + 1
        g = dict(cin=cin, cout=cout, k=k, s=s, pad=pad, pool=pool,
                 lin=lin, lp=lp, lout=lout)
        if li > 0:
            # Layers >= 2 read their (pooled, zero-padded) input from a VMEM
            # buffer holding the previous layer's *pre-pool* activation.
            drows = 2 * lin                        # pre-pool rows the pool keeps
            left = _round_up(2 * pad, 8)           # 8-aligned data start
            shift = left - 2 * pad                 # pooled idx j <-> rows 2j+shift
            lbuf = _round_up(left + drows + 2 * pad, 8)
            g.update(drows=drows, left=left, shift=shift, lbuf=lbuf)
        geom.append(g)
        cur = lout // 2 if pool else lout
    return geom


# --------------------------- fused kernel -------------------------------------

def _build_kernel(geom):
    n_conv = len(geom)

    def kernel(*refs):
        # ---- unpack refs: inputs, output, scratch ----------------------------
        patch1_ref = refs[0]                                   # (1, lout1, K1*cin1)
        conv_w = [refs[1 + 2 * i] for i in range(n_conv)]      # folded (K*cin, cout)
        conv_b = [refs[2 + 2 * i] for i in range(n_conv)]      # folded (1, cout)
        base = 1 + 2 * n_conv
        fw1_ref, fb1_ref, fw2_ref, fb2_ref = refs[base:base + 4]
        o_ref = refs[base + 4]                                 # (1, 1, 128)
        scr = refs[base + 5:]
        pre_bufs = scr[:n_conv - 1]                            # pre-pool inputs, layers 2..4
        patch_bufs = scr[n_conv - 1:]                          # im2col patches, layers 2..4

        f32 = jnp.float32

        # Zero ONLY the padding regions of the pre-pool buffers.  Done every
        # grid step (unconditionally) because on megacore each core owns its
        # own scratch and may start at any program_id.
        for i in range(1, n_conv):
            g = geom[i]
            pb = pre_bufs[i - 1]
            pb[0:g["left"], :] = jnp.zeros((g["left"], g["cin"]), f32)
            hi = g["left"] + g["drows"]
            pb[hi:g["lbuf"], :] = jnp.zeros((g["lbuf"] - hi, g["cin"]), f32)

        # ---- conv layer 1: single MXU matmul on the wrapper-built patch ------
        p1 = patch1_ref[0]                                     # (lout1, K1*cin1)
        h = jnp.maximum(
            jnp.dot(p1, conv_w[0][...], preferred_element_type=f32)
            + conv_b[0][...], 0.0)                             # pre-pool (lout1, 16)

        # ---- conv layers 2..4: fused MaxPool + pad + im2col + ONE matmul -----
        for i in range(1, n_conv):
            g = geom[i]
            pb = pre_bufs[i - 1]
            pat = patch_bufs[i - 1]
            cin, K, s, lout = g["cin"], g["k"], g["s"], g["lout"]

            # store previous layer's pre-pool output (only rows MaxPool keeps),
            # 8-aligned data start
            pb[g["left"]:g["left"] + g["drows"], :] = h[0:g["drows"], :]

            # Fused MaxPool1d(2) + zero-pad + stride-phase decimation: for each
            # stride residue r, two strided VMEM reads + one VPU max give a
            # contiguous phase of the pooled, padded input.
            for r in range(s):
                m_r = (K - 1 - r) // s + lout
                a = pb[pl.ds(2 * r + g["shift"], m_r, stride=2 * s), :]
                b = pb[pl.ds(2 * r + g["shift"] + 1, m_r, stride=2 * s), :]
                ph = jnp.maximum(a, b)                         # (m_r, cin)
                # scatter shifted copies of this phase into the patch columns
                for q in range((K - 1 - r) // s + 1):
                    t = s * q + r
                    pat[:, t * cin:(t + 1) * cin] = ph[q:q + lout, :]

            # single MXU matmul against BN-folded weights, then ReLU
            h = jnp.maximum(
                jnp.dot(pat[...], conv_w[i][...], preferred_element_type=f32)
                + conv_b[i][...], 0.0)                         # (lout_i, cout_i)

        # ---- AdaptiveAvgPool1d(1) + Flatten + classifier ----------------------
        feat = jnp.mean(h, axis=0, keepdims=True)              # (1, 128)
        hid = jnp.maximum(
            jnp.dot(feat, fw1_ref[...], preferred_element_type=f32)
            + fb1_ref[...], 0.0)                               # (1, 64)
        # Linear(64, 1) as a lane reduction (avoids a degenerate 1-wide matmul);
        # Dropout(0.5) is the identity at inference.
        z = jnp.sum(hid * fw2_ref[...], axis=1, keepdims=True) + fb2_ref[...]
        sig = 1.0 / (1.0 + jnp.exp(-z))                        # (1, 1)
        # lane-dense output row; wrapper slices column 0
        o_ref[...] = jnp.broadcast_to(sig.reshape(1, 1, 1), o_ref.shape)

    return kernel


# --------------------------- wrapper -------------------------------------------

def _fold_conv_params(p, cin, cout, k):
    # BN (inference stats) folded into conv weight & bias.
    s = p["gamma"] / jnp.sqrt(p["var"] + EPS)
    # PyTorch OIK weight -> (K*Cin, Cout), rows ordered (tap, cin).
    w_mat = jnp.transpose(p["weight"], (2, 1, 0)).reshape(k * cin, cout)
    w_fold = (w_mat * s[None, :]).astype(jnp.float32)
    b_fold = ((p["bias"] - p["mean"]) * s + p["beta"]).reshape(1, cout)
    return w_fold, b_fold.astype(jnp.float32)


def cnn_forward_pallas(x, params):
    # mirror `if x.dim() == 2: x = x.unsqueeze(1)`
    if x.ndim == 2:
        x = x[:, None, :]
    x = x.astype(jnp.float32)
    N, cin0, L = x.shape
    assert cin0 == CONV_CFG[0][0]

    geom = _conv_geometry(L)
    g0 = geom[0]

    # Layer-1 im2col patch built in the wrapper (pure layout plumbing): the raw
    # cin=1 input is lane-sparse; presenting it as a (lout, K) patch makes
    # layer 1 a single dense MXU matmul inside the kernel.
    x_nlc = jnp.transpose(x, (0, 2, 1))                            # (N, L, cin)
    xpad = jnp.pad(x_nlc, ((0, 0), (g0["pad"], g0["pad"]), (0, 0)))
    rows = (g0["s"] * jnp.arange(g0["lout"])[:, None]
            + jnp.arange(g0["k"])[None, :])                        # (lout, K)
    patch1 = xpad[:, rows, :].reshape(N, g0["lout"], g0["k"] * cin0)

    flat_inputs = [patch1]
    in_specs = [pl.BlockSpec((1, g0["lout"], g0["k"] * cin0),
                             lambda n: (n, 0, 0))]
    for (cin, cout, k, _, _, _), p in zip(CONV_CFG, params["conv"]):
        w_fold, b_fold = _fold_conv_params(p, cin, cout, k)
        flat_inputs += [w_fold, b_fold]
        in_specs += [pl.BlockSpec(w_fold.shape, lambda n: (0, 0)),
                     pl.BlockSpec(b_fold.shape, lambda n: (0, 0))]

    fw1 = params["w1"].astype(jnp.float32)                         # (128, 64)
    fb1 = params["b1"].reshape(1, -1).astype(jnp.float32)          # (1, 64)
    fw2 = params["w2"].reshape(1, -1).astype(jnp.float32)          # (1, 64) row
    fb2 = params["b2"].reshape(1, 1).astype(jnp.float32)           # (1, 1)
    for a in (fw1, fb1, fw2, fb2):
        flat_inputs.append(a)
        in_specs.append(pl.BlockSpec(a.shape, lambda n: (0, 0)))

    scratch = [pltpu.VMEM((g["lbuf"], g["cin"]), jnp.float32) for g in geom[1:]]
    scratch += [pltpu.VMEM((g["lout"], g["k"] * g["cin"]), jnp.float32)
                for g in geom[1:]]

    kernel = _build_kernel(geom)
    out = pl.pallas_call(
        kernel,
        out_shape=jax.ShapeDtypeStruct((N, 1, 128), jnp.float32),
        grid_spec=pltpu.PrefetchScalarGridSpec(
            num_scalar_prefetch=0,
            grid=(N,),
            in_specs=in_specs,
            out_specs=pl.BlockSpec((1, 1, 128), lambda n: (n, 0, 0)),
            scratch_shapes=scratch),
        compiler_params=pltpu.CompilerParams(
            dimension_semantics=("parallel",)),   # shards batch across TCs on v7x
    )(*flat_inputs)
    return out[:, 0, :1]                                           # (N, 1)


# --------------------------- parameter init -----------------------------------

def init_params(key):
    params = {"conv": []}
    for (cin, cout, k, _, _, _) in CONV_CFG:
        key, kw, kb, kg, kbe, km, kv = jax.random.split(key, 7)
        params["conv"].append(dict(
            weight=0.1 * jax.random.normal(kw, (cout, cin, k), jnp.float32),
            bias=0.05 * jax.random.normal(kb, (cout,), jnp.float32),
            gamma=1.0 + 0.1 * jax.random.normal(kg, (cout,), jnp.float32),
            beta=0.05 * jax.random.normal(kbe, (cout,), jnp.float32),
            mean=0.05 * jax.random.normal(km, (cout,), jnp.float32),
            var=1.0 + 0.1 * jax.random.uniform(kv, (cout,), jnp.float32),
        ))
    key, k1, k2, k3, k4 = jax.random.split(key, 5)
    params["w1"] = 0.1 * jax.random.normal(k1, (128, 64), jnp.float32)
    params["b1"] = 0.05 * jax.random.normal(k2, (64,), jnp.float32)
    params["w2"] = 0.1 * jax.random.normal(k3, (64, 1), jnp.float32)
    params["b2"] = 0.05 * jax.random.normal(k4, (1,), jnp.float32)
    return params


# --------------------------- plain-JAX reference --------------------------------

def cnn_forward_ref(x, params):
    if x.ndim == 2:
        x = x[:, None, :]
    h = x.astype(jnp.float32)                                      # NCL
    for cfg, p in zip(CONV_CFG, params["conv"]):
        _, _, k, stride, pad, pool = cfg
        h = lax.conv_general_dilated(
            h, p["weight"], window_strides=(stride,), padding=[(pad, pad)],
            dimension_numbers=("NCH", "OIH", "NCH"))
        h = h + p["bias"][None, :, None]
        h = (h - p["mean"][None, :, None]) / jnp.sqrt(p["var"][None, :, None] + EPS)
        h = h * p["gamma"][None, :, None] + p["beta"][None, :, None]
        h = jnp.maximum(h, 0.0)
        if pool:
            L = h.shape[-1] // 2
            h = h[:, :, :2 * L].reshape(h.shape[0], h.shape[1], L, 2).max(-1)
    h = h.mean(-1)                                                 # (N, 128)
    h = jnp.maximum(h @ params["w1"] + params["b1"], 0.0)
    return jax.nn.sigmoid(h @ params["w2"] + params["b2"])


# --------------------------- main ------------------------------------------------

if __name__ == "__main__":
    key = jax.random.PRNGKey(0)
    kx, kp = jax.random.split(key)
    params = init_params(kp)

    # small but consistent shapes: batch=2, channels=1, seq=256
    x = jax.random.normal(kx, (2, 1, 256), jnp.float32)

    out = jax.block_until_ready(jax.jit(cnn_forward_pallas)(x, params))
    ref = jax.block_until_ready(jax.jit(cnn_forward_ref)(x, params))

    assert out.shape == (2, 1), out.shape
    assert bool(jnp.all(jnp.isfinite(out)))
    # tolerance accommodates MXU matmul summation-order / precision differences
    assert jnp.allclose(out, ref, atol=1e-3, rtol=1e-3), (out, ref)

    print("KERNEL_OK")
</pallas_src>

<mosaic_0001>
module attributes {stable_mosaic.version = 11 : i64} {
  func.func @kernel(%arg0: i32, %arg1: memref<1x86x50xf32, #tpu.memory_space<vmem>>, %arg2: memref<50x16xf32, #tpu.memory_space<vmem>>, %arg3: memref<1x16xf32, #tpu.memory_space<vmem>>, %arg4: memref<320x32xf32, #tpu.memory_space<vmem>>, %arg5: memref<1x32xf32, #tpu.memory_space<vmem>>, %arg6: memref<320x64xf32, #tpu.memory_space<vmem>>, %arg7: memref<1x64xf32, #tpu.memory_space<vmem>>, %arg8: memref<320x128xf32, #tpu.memory_space<vmem>>, %arg9: memref<1x128xf32, #tpu.memory_space<vmem>>, %arg10: memref<128x64xf32, #tpu.memory_space<vmem>>, %arg11: memref<1x64xf32, #tpu.memory_space<vmem>>, %arg12: memref<1x64xf32, #tpu.memory_space<vmem>>, %arg13: memref<1x1xf32, #tpu.memory_space<vmem>>, %arg14: memref<1x1x128xf32, #tpu.memory_space<vmem>>, %arg15: memref<136x16xf32, #tpu.memory_space<vmem>>, %arg16: memref<48x32xf32, #tpu.memory_space<vmem>>, %arg17: memref<24x64xf32, #tpu.memory_space<vmem>>, %arg18: memref<22x320xf32, #tpu.memory_space<vmem>>, %arg19: memref<12x320xf32, #tpu.memory_space<vmem>>, %arg20: memref<6x320xf32, #tpu.memory_space<vmem>>) attributes {dimension_semantics = [#tpu.dimension_semantics<parallel>], iteration_bounds = array<i64: 2>, scalar_prefetch = 0 : i64, scratch_operands = 6 : i64, tpu.core_type = #tpu.core_type<tc>, window_params = [{transform_indices = @transform_0, window_bounds = array<i64: 1, 86, 50>}, {pipeline_mode = #tpu.pipeline_mode<synchronous>, transform_indices = @transform_1, window_bounds = array<i64: 50, 16>}, {pipeline_mode = #tpu.pipeline_mode<synchronous>, transform_indices = @transform_2, window_bounds = array<i64: 1, 16>}, {pipeline_mode = #tpu.pipeline_mode<synchronous>, transform_indices = @transform_3, window_bounds = array<i64: 320, 32>}, {pipeline_mode = #tpu.pipeline_mode<synchronous>, transform_indices = @transform_4, window_bounds = array<i64: 1, 32>}, {pipeline_mode = #tpu.pipeline_mode<synchronous>, transform_indices = @transform_5, window_bounds = array<i64: 320, 64>}, {pipeline_mode = #tpu.pipeline_mode<synchronous>, transform_indices = @transform_6, window_bounds = array<i64: 1, 64>}, {pipeline_mode = #tpu.pipeline_mode<synchronous>, transform_indices = @transform_7, window_bounds = array<i64: 320, 128>}, {pipeline_mode = #tpu.pipeline_mode<synchronous>, transform_indices = @transform_8, window_bounds = array<i64: 1, 128>}, {pipeline_mode = #tpu.pipeline_mode<synchronous>, transform_indices = @transform_9, window_bounds = array<i64: 128, 64>}, {pipeline_mode = #tpu.pipeline_mode<synchronous>, transform_indices = @transform_10, window_bounds = array<i64: 1, 64>}, {pipeline_mode = #tpu.pipeline_mode<synchronous>, transform_indices = @transform_11, window_bounds = array<i64: 1, 64>}, {pipeline_mode = #tpu.pipeline_mode<synchronous>, transform_indices = @transform_12, window_bounds = array<i64: 1, 1>}, {transform_indices = @transform_13, window_bounds = array<i64: 1, 1, 128>}]} {
    %cst = arith.constant 0.000000e+00 : f32
    %0 = vector.broadcast %cst : f32 to vector<24x16xf32>
    %c0 = arith.constant 0 : index
    %c0_0 = arith.constant 0 : index
    %1 = vector.load %arg15[%c0, %c0_0] : memref<136x16xf32, #tpu.memory_space<vmem>>, vector<24x16xf32>
    tpu.vector_store %arg15[%c0, %c0_0], %0 {strides = array<i32>} : memref<136x16xf32, #tpu.memory_space<vmem>>, vector<24x16xf32>,
    %cst_1 = arith.constant 0.000000e+00 : f32
    %2 = vector.broadcast %cst_1 : f32 to vector<26x16xf32>
    %c110 = arith.constant 110 : index
    %c0_2 = arith.constant 0 : index
    %3 = vector.load %arg15[%c110, %c0_2] : memref<136x16xf32, #tpu.memory_space<vmem>>, vector<26x16xf32>
    tpu.vector_store %arg15[%c110, %c0_2], %2 {strides = array<i32>} : memref<136x16xf32, #tpu.memory_space<vmem>>, vector<26x16xf32>,
    %cst_3 = arith.constant 0.000000e+00 : f32
    %4 = vector.broadcast %cst_3 : f32 to vector<16x32xf32>
    %c0_4 = arith.constant 0 : index
    %c0_5 = arith.constant 0 : index
    %5 = vector.load %arg16[%c0_4, %c0_5] : memref<48x32xf32, #tpu.memory_space<vmem>>, vector<16x32xf32>
    tpu.vector_store %arg16[%c0_4, %c0_5], %4 {strides = array<i32>} : memref<48x32xf32, #tpu.memory_space<vmem>>, vector<16x32xf32>,
    %cst_6 = arith.constant 0.000000e+00 : f32
    %6 = vector.broadcast %cst_6 : f32 to vector<10x32xf32>
    %c38 = arith.constant 38 : index
    %c0_7 = arith.constant 0 : index
    %7 = vector.load %arg16[%c38, %c0_7] : memref<48x32xf32, #tpu.memory_space<vmem>>, vector<10x32xf32>
    tpu.vector_store %arg16[%c38, %c0_7], %6 {strides = array<i32>} : memref<48x32xf32, #tpu.memory_space<vmem>>, vector<10x32xf32>,
    %cst_8 = arith.constant 0.000000e+00 : f32
    %8 = vector.broadcast %cst_8 : f32 to vector<8x64xf32>
    %c0_9 = arith.constant 0 : index
    %c0_10 = arith.constant 0 : index
    %9 = vector.load %arg17[%c0_9, %c0_10] : memref<24x64xf32, #tpu.memory_space<vmem>>, vector<8x64xf32>
    tpu.vector_store %arg17[%c0_9, %c0_10], %8 {strides = array<i32>} : memref<24x64xf32, #tpu.memory_space<vmem>>, vector<8x64xf32>,
    %cst_11 = arith.constant 0.000000e+00 : f32
    %10 = vector.broadcast %cst_11 : f32 to vector<4x64xf32>
    %c20 = arith.constant 20 : index
    %c0_12 = arith.constant 0 : index
    %11 = vector.load %arg17[%c20, %c0_12] : memref<24x64xf32, #tpu.memory_space<vmem>>, vector<4x64xf32>
    tpu.vector_store %arg17[%c20, %c0_12], %10 {strides = array<i32>} : memref<24x64xf32, #tpu.memory_space<vmem>>, vector<4x64xf32>,
    %c0_13 = arith.constant 0 : index
    %c0_14 = arith.constant 0 : index
    %c0_15 = arith.constant 0 : index
    %12 = vector.load %arg1[%c0_13, %c0_14, %c0_15] : memref<1x86x50xf32, #tpu.memory_space<vmem>>, vector<1x86x50xf32>
    %13 = vector.shape_cast %12 : vector<1x86x50xf32> to vector<86x50xf32>
    %c0_16 = arith.constant 0 : index
    %c0_17 = arith.constant 0 : index
    %14 = vector.load %arg2[%c0_16, %c0_17] : memref<50x16xf32, #tpu.memory_space<vmem>>, vector<50x16xf32>
    %cst_18 = arith.constant dense<0.000000e+00> : vector<86x16xf32>
    %15 = tpu.matmul %13, %14, %cst_18 {dimension_numbers = #tpu.dot_dimension_numbers<[1], [0], [0], [1], [0, 0, 1, 1], [], []>} : vector<86x50xf32>, vector<50x16xf32>, vector<86x16xf32> -> vector<86x16xf32>
    %c0_19 = arith.constant 0 : index
    %c0_20 = arith.constant 0 : index
    %16 = vector.load %arg3[%c0_19, %c0_20] : memref<1x16xf32, #tpu.memory_space<vmem>>, vector<1x16xf32>
    %17 = vector.broadcast %16 : vector<1x16xf32> to vector<86x16xf32>
    %18 = arith.addf %15, %17 : vector<86x16xf32>
    %cst_21 = arith.constant 0.000000e+00 : f32
    %19 = vector.broadcast %cst_21 : f32 to vector<86x16xf32>
    %20 = arith.maximumf %18, %19 : vector<86x16xf32>
    %c24 = arith.constant 24 : index
    %c0_22 = arith.constant 0 : index
    %21 = vector.load %arg15[%c24, %c0_22] : memref<136x16xf32, #tpu.memory_space<vmem>>, vector<86x16xf32>
    tpu.vector_store %arg15[%c24, %c0_22], %20 {strides = array<i32>} : memref<136x16xf32, #tpu.memory_space<vmem>>, vector<86x16xf32>,
    %c4 = arith.constant 4 : index
    %c0_23 = arith.constant 0 : index
    %22 = tpu.strided_load %arg15[%c4, %c0_23] {strides = array<i32: 4, 1>} : memref<136x16xf32, #tpu.memory_space<vmem>>, vector<31x16xf32>
    %c5 = arith.constant 5 : index
    %c0_24 = arith.constant 0 : index
    %23 = tpu.strided_load %arg15[%c5, %c0_24] {strides = array<i32: 4, 1>} : memref<136x16xf32, #tpu.memory_space<vmem>>, vector<31x16xf32>
    %24 = arith.maximumf %22, %23 : vector<31x16xf32>
    %25 = vector.extract_strided_slice %24 {offsets = [0, 0], sizes = [22, 16], strides = [1, 1]} : vector<31x16xf32> to vector<22x16xf32>
    %c0_25 = arith.constant 0 : index
    %c0_26 = arith.constant 0 : index
    %26 = vector.load %arg18[%c0_25, %c0_26] : memref<22x320xf32, #tpu.memory_space<vmem>>, vector<22x16xf32>
    tpu.vector_store %arg18[%c0_25, %c0_26], %25 {strides = array<i32>} : memref<22x320xf32, #tpu.memory_space<vmem>>, vector<22x16xf32>,
    %27 = vector.extract_strided_slice %24 {offsets = [1, 0], sizes = [22, 16], strides = [1, 1]} : vector<31x16xf32> to vector<22x16xf32>
    %c0_27 = arith.constant 0 : index
    %c32 = arith.constant 32 : index
    %28 = vector.load %arg18[%c0_27, %c32] : memref<22x320xf32, #tpu.memory_space<vmem>>, vector<22x16xf32>
    tpu.vector_store %arg18[%c0_27, %c32], %27 {strides = array<i32>} : memref<22x320xf32, #tpu.memory_space<vmem>>, vector<22x16xf32>,
    %29 = vector.extract_strided_slice %24 {offsets = [2, 0], sizes = [22, 16], strides = [1, 1]} : vector<31x16xf32> to vector<22x16xf32>
    %c0_28 = arith.constant 0 : index
    %c64 = arith.constant 64 : index
    %30 = vector.load %arg18[%c0_28, %c64] : memref<22x320xf32, #tpu.memory_space<vmem>>, vector<22x16xf32>
    tpu.vector_store %arg18[%c0_28, %c64], %29 {strides = array<i32>} : memref<22x320xf32, #tpu.memory_space<vmem>>, vector<22x16xf32>,
    %31 = vector.extract_strided_slice %24 {offsets = [3, 0], sizes = [22, 16], strides = [1, 1]} : vector<31x16xf32> to vector<22x16xf32>
    %c0_29 = arith.constant 0 : index
    %c96 = arith.constant 96 : index
    %32 = vector.load %arg18[%c0_29, %c96] : memref<22x320xf32, #tpu.memory_space<vmem>>, vector<22x16xf32>
    tpu.vector_store %arg18[%c0_29, %c96], %31 {strides = array<i32>} : memref<22x320xf32, #tpu.memory_space<vmem>>, vector<22x16xf32>,
    %33 = vector.extract_strided_slice %24 {offsets = [4, 0], sizes = [22, 16], strides = [1, 1]} : vector<31x16xf32> to vector<22x16xf32>
    %c0_30 = arith.constant 0 : index
    %c128 = arith.constant 128 : index
    %34 = vector.load %arg18[%c0_30, %c128] : memref<22x320xf32, #tpu.memory_space<vmem>>, vector<22x16xf32>
    tpu.vector_store %arg18[%c0_30, %c128], %33 {strides = array<i32>} : memref<22x320xf32, #tpu.memory_space<vmem>>, vector<22x16xf32>,
    %35 = vector.extract_strided_slice %24 {offsets = [5, 0], sizes = [22, 16], strides = [1, 1]} : vector<31x16xf32> to vector<22x16xf32>
    %c0_31 = arith.constant 0 : index
    %c160 = arith.constant 160 : index
    %36 = vector.load %arg18[%c0_31, %c160] : memref<22x320xf32, #tpu.memory_space<vmem>>, vector<22x16xf32>
    tpu.vector_store %arg18[%c0_31, %c160], %35 {strides = array<i32>} : memref<22x320xf32, #tpu.memory_space<vmem>>, vector<22x16xf32>,
    %37 = vector.extract_strided_slice %24 {offsets = [6, 0], sizes = [22, 16], strides = [1, 1]} : vector<31x16xf32> to vector<22x16xf32>
    %c0_32 = arith.constant 0 : index
    %c192 = arith.constant 192 : index
    %38 = vector.load %arg18[%c0_32, %c192] : memref<22x320xf32, #tpu.memory_space<vmem>>, vector<22x16xf32>
    tpu.vector_store %arg18[%c0_32, %c192], %37 {strides = array<i32>} : memref<22x320xf32, #tpu.memory_space<vmem>>, vector<22x16xf32>,
    %39 = vector.extract_strided_slice %24 {offsets = [7, 0], sizes = [22, 16], strides = [1, 1]} : vector<31x16xf32> to vector<22x16xf32>
    %c0_33 = arith.constant 0 : index
    %c224 = arith.constant 224 : index
    %40 = vector.load %arg18[%c0_33, %c224] : memref<22x320xf32, #tpu.memory_space<vmem>>, vector<22x16xf32>
    tpu.vector_store %arg18[%c0_33, %c224], %39 {strides = array<i32>} : memref<22x320xf32, #tpu.memory_space<vmem>>, vector<22x16xf32>,
    %41 = vector.extract_strided_slice %24 {offsets = [8, 0], sizes = [22, 16], strides = [1, 1]} : vector<31x16xf32> to vector<22x16xf32>
    %c0_34 = arith.constant 0 : index
    %c256 = arith.constant 256 : index
    %42 = vector.load %arg18[%c0_34, %c256] : memref<22x320xf32, #tpu.memory_space<vmem>>, vector<22x16xf32>
    tpu.vector_store %arg18[%c0_34, %c256], %41 {strides = array<i32>} : memref<22x320xf32, #tpu.memory_space<vmem>>, vector<22x16xf32>,
    %43 = vector.extract_strided_slice %24 {offsets = [9, 0], sizes = [22, 16], strides = [1, 1]} : vector<31x16xf32> to vector<22x16xf32>
    %c0_35 = arith.constant 0 : index
    %c288 = arith.constant 288 : index
    %44 = vector.load %arg18[%c0_35, %c288] : memref<22x320xf32, #tpu.memory_space<vmem>>, vector<22x16xf32>
    tpu.vector_store %arg18[%c0_35, %c288], %43 {strides = array<i32>} : memref<22x320xf32, #tpu.memory_space<vmem>>, vector<22x16xf32>,
    %c6 = arith.constant 6 : index
    %c0_36 = arith.constant 0 : index
    %45 = tpu.strided_load %arg15[%c6, %c0_36] {strides = array<i32: 4, 1>} : memref<136x16xf32, #tpu.memory_space<vmem>>, vector<31x16xf32>
    %c7 = arith.constant 7 : index
    %c0_37 = arith.constant 0 : index
    %46 = tpu.strided_load %arg15[%c7, %c0_37] {strides = array<i32: 4, 1>} : memref<136x16xf32, #tpu.memory_space<vmem>>, vector<31x16xf32>
    %47 = arith.maximumf %45, %46 : vector<31x16xf32>
    %48 = vector.extract_strided_slice %47 {offsets = [0, 0], sizes = [22, 16], strides = [1, 1]} : vector<31x16xf32> to vector<22x16xf32>
    %c0_38 = arith.constant 0 : index
    %c16 = arith.constant 16 : index
    %49 = vector.load %arg18[%c0_38, %c16] : memref<22x320xf32, #tpu.memory_space<vmem>>, vector<22x16xf32>
    tpu.vector_store %arg18[%c0_38, %c16], %48 {strides = array<i32>} : memref<22x320xf32, #tpu.memory_space<vmem>>, vector<22x16xf32>,
    %50 = vector.extract_strided_slice %47 {offsets = [1, 0], sizes = [22, 16], strides = [1, 1]} : vector<31x16xf32> to vector<22x16xf32>
    %c0_39 = arith.constant 0 : index
    %c48 = arith.constant 48 : index
    %51 = vector.load %arg18[%c0_39, %c48] : memref<22x320xf32, #tpu.memory_space<vmem>>, vector<22x16xf32>
    tpu.vector_store %arg18[%c0_39, %c48], %50 {strides = array<i32>} : memref<22x320xf32, #tpu.memory_space<vmem>>, vector<22x16xf32>,
    %52 = vector.extract_strided_slice %47 {offsets = [2, 0], sizes = [22, 16], strides = [1, 1]} : vector<31x16xf32> to vector<22x16xf32>
    %c0_40 = arith.constant 0 : index
    %c80 = arith.constant 80 : index
    %53 = vector.load %arg18[%c0_40, %c80] : memref<22x320xf32, #tpu.memory_space<vmem>>, vector<22x16xf32>
    tpu.vector_store %arg18[%c0_40, %c80], %52 {strides = array<i32>} : memref<22x320xf32, #tpu.memory_space<vmem>>, vector<22x16xf32>,
    %54 = vector.extract_strided_slice %47 {offsets = [3, 0], sizes = [22, 16], strides = [1, 1]} : vector<31x16xf32> to vector<22x16xf32>
    %c0_41 = arith.constant 0 : index
    %c112 = arith.constant 112 : index
    %55 = vector.load %arg18[%c0_41, %c112] : memref<22x320xf32, #tpu.memory_space<vmem>>, vector<22x16xf32>
    tpu.vector_store %arg18[%c0_41, %c112], %54 {strides = array<i32>} : memref<22x320xf32, #tpu.memory_space<vmem>>, vector<22x16xf32>,
    %56 = vector.extract_strided_slice %47 {offsets = [4, 0], sizes = [22, 16], strides = [1, 1]} : vector<31x16xf32> to vector<22x16xf32>
    %c0_42 = arith.constant 0 : index
    %c144 = arith.constant 144 : index
    %57 = vector.load %arg18[%c0_42, %c144] : memref<22x320xf32, #tpu.memory_space<vmem>>, vector<22x16xf32>
    tpu.vector_store %arg18[%c0_42, %c144], %56 {strides = array<i32>} : memref<22x320xf32, #tpu.memory_space<vmem>>, vector<22x16xf32>,
    %58 = vector.extract_strided_slice %47 {offsets = [5, 0], sizes = [22, 16], strides = [1, 1]} : vector<31x16xf32> to vector<22x16xf32>
    %c0_43 = arith.constant 0 : index
    %c176 = arith.constant 176 : index
    %59 = vector.load %arg18[%c0_43, %c176] : memref<22x320xf32, #tpu.memory_space<vmem>>, vector<22x16xf32>
    tpu.vector_store %arg18[%c0_43, %c176], %58 {strides = array<i32>} : memref<22x320xf32, #tpu.memory_space<vmem>>, vector<22x16xf32>,
    %60 = vector.extract_strided_slice %47 {offsets = [6, 0], sizes = [22, 16], strides = [1, 1]} : vector<31x16xf32> to vector<22x16xf32>
    %c0_44 = arith.constant 0 : index
    %c208 = arith.constant 208 : index
    %61 = vector.load %arg18[%c0_44, %c208] : memref<22x320xf32, #tpu.memory_space<vmem>>, vector<22x16xf32>
    tpu.vector_store %arg18[%c0_44, %c208], %60 {strides = array<i32>} : memref<22x320xf32, #tpu.memory_space<vmem>>, vector<22x16xf32>,
    %62 = vector.extract_strided_slice %47 {offsets = [7, 0], sizes = [22, 16], strides = [1, 1]} : vector<31x16xf32> to vector<22x16xf32>
    %c0_45 = arith.constant 0 : index
    %c240 = arith.constant 240 : index
    %63 = vector.load %arg18[%c0_45, %c240] : memref<22x320xf32, #tpu.memory_space<vmem>>, vector<22x16xf32>
    tpu.vector_store %arg18[%c0_45, %c240], %62 {strides = array<i32>} : memref<22x320xf32, #tpu.memory_space<vmem>>, vector<22x16xf32>,
    %64 = vector.extract_strided_slice %47 {offsets = [8, 0], sizes = [22, 16], strides = [1, 1]} : vector<31x16xf32> to vector<22x16xf32>
    %c0_46 = arith.constant 0 : index
    %c272 = arith.constant 272 : index
    %65 = vector.load %arg18[%c0_46, %c272] : memref<22x320xf32, #tpu.memory_space<vmem>>, vector<22x16xf32>
    tpu.vector_store %arg18[%c0_46, %c272], %64 {strides = array<i32>} : memref<22x320xf32, #tpu.memory_space<vmem>>, vector<22x16xf32>,
    %66 = vector.extract_strided_slice %47 {offsets = [9, 0], sizes = [22, 16], strides = [1, 1]} : vector<31x16xf32> to vector<22x16xf32>
    %c0_47 = arith.constant 0 : index
    %c304 = arith.constant 304 : index
    %67 = vector.load %arg18[%c0_47, %c304] : memref<22x320xf32, #tpu.memory_space<vmem>>, vector<22x16xf32>
    tpu.vector_store %arg18[%c0_47, %c304], %66 {strides = array<i32>} : memref<22x320xf32, #tpu.memory_space<vmem>>, vector<22x16xf32>,
    %c0_48 = arith.constant 0 : index
    %c0_49 = arith.constant 0 : index
    %68 = vector.load %arg18[%c0_48, %c0_49] : memref<22x320xf32, #tpu.memory_space<vmem>>, vector<22x320xf32>
    %c0_50 = arith.constant 0 : index
    %c0_51 = arith.constant 0 : index
    %69 = vector.load %arg4[%c0_50, %c0_51] : memref<320x32xf32, #tpu.memory_space<vmem>>, vector<320x32xf32>
    %cst_52 = arith.constant dense<0.000000e+00> : vector<22x32xf32>
    %70 = tpu.matmul %68, %69, %cst_52 {dimension_numbers = #tpu.dot_dimension_numbers<[1], [0], [0], [1], [0, 0, 1, 1], [], []>} : vector<22x320xf32>, vector<320x32xf32>, vector<22x32xf32> -> vector<22x32xf32>
    %c0_53 = arith.constant 0 : index
    %c0_54 = arith.constant 0 : index
    %71 = vector.load %arg5[%c0_53, %c0_54] : memref<1x32xf32, #tpu.memory_space<vmem>>, vector<1x32xf32>
    %72 = vector.broadcast %71 : vector<1x32xf32> to vector<22x32xf32>
    %73 = arith.addf %70, %72 : vector<22x32xf32>
    %cst_55 = arith.constant 0.000000e+00 : f32
    %74 = vector.broadcast %cst_55 : f32 to vector<22x32xf32>
    %75 = arith.maximumf %73, %74 : vector<22x32xf32>
    %c16_56 = arith.constant 16 : index
    %c0_57 = arith.constant 0 : index
    %76 = vector.load %arg16[%c16_56, %c0_57] : memref<48x32xf32, #tpu.memory_space<vmem>>, vector<22x32xf32>
    tpu.vector_store %arg16[%c16_56, %c0_57], %75 {strides = array<i32>} : memref<48x32xf32, #tpu.memory_space<vmem>>, vector<22x32xf32>,
    %c6_58 = arith.constant 6 : index
    %c0_59 = arith.constant 0 : index
    %77 = tpu.strided_load %arg16[%c6_58, %c0_59] {strides = array<i32: 2, 1>} : memref<48x32xf32, #tpu.memory_space<vmem>>, vector<21x32xf32>
    %c7_60 = arith.constant 7 : index
    %c0_61 = arith.constant 0 : index
    %78 = tpu.strided_load %arg16[%c7_60, %c0_61] {strides = array<i32: 2, 1>} : memref<48x32xf32, #tpu.memory_space<vmem>>, vector<21x32xf32>
    %79 = arith.maximumf %77, %78 : vector<21x32xf32>
    %80 = vector.extract_strided_slice %79 {offsets = [0, 0], sizes = [12, 32], strides = [1, 1]} : vector<21x32xf32> to vector<12x32xf32>
    %c0_62 = arith.constant 0 : index
    %c0_63 = arith.constant 0 : index
    %81 = vector.load %arg19[%c0_62, %c0_63] : memref<12x320xf32, #tpu.memory_space<vmem>>, vector<12x32xf32>
    tpu.vector_store %arg19[%c0_62, %c0_63], %80 {strides = array<i32>} : memref<12x320xf32, #tpu.memory_space<vmem>>, vector<12x32xf32>,
    %82 = vector.extract_strided_slice %79 {offsets = [1, 0], sizes = [12, 32], strides = [1, 1]} : vector<21x32xf32> to vector<12x32xf32>
    %c0_64 = arith.constant 0 : index
    %c32_65 = arith.constant 32 : index
    %83 = vector.load %arg19[%c0_64, %c32_65] : memref<12x320xf32, #tpu.memory_space<vmem>>, vector<12x32xf32>
    tpu.vector_store %arg19[%c0_64, %c32_65], %82 {strides = array<i32>} : memref<12x320xf32, #tpu.memory_space<vmem>>, vector<12x32xf32>,
    %84 = vector.extract_strided_slice %79 {offsets = [2, 0], sizes = [12, 32], strides = [1, 1]} : vector<21x32xf32> to vector<12x32xf32>
    %c0_66 = arith.constant 0 : index
    %c64_67 = arith.constant 64 : index
    %85 = vector.load %arg19[%c0_66, %c64_67] : memref<12x320xf32, #tpu.memory_space<vmem>>, vector<12x32xf32>
    tpu.vector_store %arg19[%c0_66, %c64_67], %84 {strides = array<i32>} : memref<12x320xf32, #tpu.memory_space<vmem>>, vector<12x32xf32>,
    %86 = vector.extract_strided_slice %79 {offsets = [3, 0], sizes = [12, 32], strides = [1, 1]} : vector<21x32xf32> to vector<12x32xf32>
    %c0_68 = arith.constant 0 : index
    %c96_69 = arith.constant 96 : index
    %87 = vector.load %arg19[%c0_68, %c96_69] : memref<12x320xf32, #tpu.memory_space<vmem>>, vector<12x32xf32>
    tpu.vector_store %arg19[%c0_68, %c96_69], %86 {strides = array<i32>} : memref<12x320xf32, #tpu.memory_space<vmem>>, vector<12x32xf32>,
    %88 = vector.extract_strided_slice %79 {offsets = [4, 0], sizes = [12, 32], strides = [1, 1]} : vector<21x32xf32> to vector<12x32xf32>
    %c0_70 = arith.constant 0 : index
    %c128_71 = arith.constant 128 : index
    %89 = vector.load %arg19[%c0_70, %c128_71] : memref<12x320xf32, #tpu.memory_space<vmem>>, vector<12x32xf32>
    tpu.vector_store %arg19[%c0_70, %c128_71], %88 {strides = array<i32>} : memref<12x320xf32, #tpu.memory_space<vmem>>, vector<12x32xf32>,
    %90 = vector.extract_strided_slice %79 {offsets = [5, 0], sizes = [12, 32], strides = [1, 1]} : vector<21x32xf32> to vector<12x32xf32>
    %c0_72 = arith.constant 0 : index
    %c160_73 = arith.constant 160 : index
    %91 = vector.load %arg19[%c0_72, %c160_73] : memref<12x320xf32, #tpu.memory_space<vmem>>, vector<12x32xf32>
    tpu.vector_store %arg19[%c0_72, %c160_73], %90 {strides = array<i32>} : memref<12x320xf32, #tpu.memory_space<vmem>>, vector<12x32xf32>,
    %92 = vector.extract_strided_slice %79 {offsets = [6, 0], sizes = [12, 32], strides = [1, 1]} : vector<21x32xf32> to vector<12x32xf32>
    %c0_74 = arith.constant 0 : index
    %c192_75 = arith.constant 192 : index
    %93 = vector.load %arg19[%c0_74, %c192_75] : memref<12x320xf32, #tpu.memory_space<vmem>>, vector<12x32xf32>
    tpu.vector_store %arg19[%c0_74, %c192_75], %92 {strides = array<i32>} : memref<12x320xf32, #tpu.memory_space<vmem>>, vector<12x32xf32>,
    %94 = vector.extract_strided_slice %79 {offsets = [7, 0], sizes = [12, 32], strides = [1, 1]} : vector<21x32xf32> to vector<12x32xf32>
    %c0_76 = arith.constant 0 : index
    %c224_77 = arith.constant 224 : index
    %95 = vector.load %arg19[%c0_76, %c224_77] : memref<12x320xf32, #tpu.memory_space<vmem>>, vector<12x32xf32>
    tpu.vector_store %arg19[%c0_76, %c224_77], %94 {strides = array<i32>} : memref<12x320xf32, #tpu.memory_space<vmem>>, vector<12x32xf32>,
    %96 = vector.extract_strided_slice %79 {offsets = [8, 0], sizes = [12, 32], strides = [1, 1]} : vector<21x32xf32> to vector<12x32xf32>
    %c0_78 = arith.constant 0 : index
    %c256_79 = arith.constant 256 : index
    %97 = vector.load %arg19[%c0_78, %c256_79] : memref<12x320xf32, #tpu.memory_space<vmem>>, vector<12x32xf32>
    tpu.vector_store %arg19[%c0_78, %c256_79], %96 {strides = array<i32>} : memref<12x320xf32, #tpu.memory_space<vmem>>, vector<12x32xf32>,
    %98 = vector.extract_strided_slice %79 {offsets = [9, 0], sizes = [12, 32], strides = [1, 1]} : vector<21x32xf32> to vector<12x32xf32>
    %c0_80 = arith.constant 0 : index
    %c288_81 = arith.constant 288 : index
    %99 = vector.load %arg19[%c0_80, %c288_81] : memref<12x320xf32, #tpu.memory_space<vmem>>, vector<12x32xf32>
    tpu.vector_store %arg19[%c0_80, %c288_81], %98 {strides = array<i32>} : memref<12x320xf32, #tpu.memory_space<vmem>>, vector<12x32xf32>,
    %c0_82 = arith.constant 0 : index
    %c0_83 = arith.constant 0 : index
    %100 = vector.load %arg19[%c0_82, %c0_83] : memref<12x320xf32, #tpu.memory_space<vmem>>, vector<12x320xf32>
    %c0_84 = arith.constant 0 : index
    %c0_85 = arith.constant 0 : index
    %101 = vector.load %arg6[%c0_84, %c0_85] : memref<320x64xf32, #tpu.memory_space<vmem>>, vector<320x64xf32>
    %cst_86 = arith.constant dense<0.000000e+00> : vector<12x64xf32>
    %102 = tpu.matmul %100, %101, %cst_86 {dimension_numbers = #tpu.dot_dimension_numbers<[1], [0], [0], [1], [0, 0, 1, 1], [], []>} : vector<12x320xf32>, vector<320x64xf32>, vector<12x64xf32> -> vector<12x64xf32>
    %c0_87 = arith.constant 0 : index
    %c0_88 = arith.constant 0 : index
    %103 = vector.load %arg7[%c0_87, %c0_88] : memref<1x64xf32, #tpu.memory_space<vmem>>, vector<1x64xf32>
    %104 = vector.broadcast %103 : vector<1x64xf32> to vector<12x64xf32>
    %105 = arith.addf %102, %104 : vector<12x64xf32>
    %cst_89 = arith.constant 0.000000e+00 : f32
    %106 = vector.broadcast %cst_89 : f32 to vector<12x64xf32>
    %107 = arith.maximumf %105, %106 : vector<12x64xf32>
    %c8 = arith.constant 8 : index
    %c0_90 = arith.constant 0 : index
    %108 = vector.load %arg17[%c8, %c0_90] : memref<24x64xf32, #tpu.memory_space<vmem>>, vector<12x64xf32>
    tpu.vector_store %arg17[%c8, %c0_90], %107 {strides = array<i32>} : memref<24x64xf32, #tpu.memory_space<vmem>>, vector<12x64xf32>,
    %c4_91 = arith.constant 4 : index
    %c0_92 = arith.constant 0 : index
    %109 = tpu.strided_load %arg17[%c4_91, %c0_92] {strides = array<i32: 2, 1>} : memref<24x64xf32, #tpu.memory_space<vmem>>, vector<10x64xf32>
    %c5_93 = arith.constant 5 : index
    %c0_94 = arith.constant 0 : index
    %110 = tpu.strided_load %arg17[%c5_93, %c0_94] {strides = array<i32: 2, 1>} : memref<24x64xf32, #tpu.memory_space<vmem>>, vector<10x64xf32>
    %111 = arith.maximumf %109, %110 : vector<10x64xf32>
    %112 = vector.extract_strided_slice %111 {offsets = [0, 0], sizes = [6, 64], strides = [1, 1]} : vector<10x64xf32> to vector<6x64xf32>
    %c0_95 = arith.constant 0 : index
    %c0_96 = arith.constant 0 : index
    %113 = vector.load %arg20[%c0_95, %c0_96] : memref<6x320xf32, #tpu.memory_space<vmem>>, vector<6x64xf32>
    tpu.vector_store %arg20[%c0_95, %c0_96], %112 {strides = array<i32>} : memref<6x320xf32, #tpu.memory_space<vmem>>, vector<6x64xf32>,
    %114 = vector.extract_strided_slice %111 {offsets = [1, 0], sizes = [6, 64], strides = [1, 1]} : vector<10x64xf32> to vector<6x64xf32>
    %c0_97 = arith.constant 0 : index
    %c64_98 = arith.constant 64 : index
    %115 = vector.load %arg20[%c0_97, %c64_98] : memref<6x320xf32, #tpu.memory_space<vmem>>, vector<6x64xf32>
    tpu.vector_store %arg20[%c0_97, %c64_98], %114 {strides = array<i32>} : memref<6x320xf32, #tpu.memory_space<vmem>>, vector<6x64xf32>,
    %116 = vector.extract_strided_slice %111 {offsets = [2, 0], sizes = [6, 64], strides = [1, 1]} : vector<10x64xf32> to vector<6x64xf32>
    %c0_99 = arith.constant 0 : index
    %c128_100 = arith.constant 128 : index
    %117 = vector.load %arg20[%c0_99, %c128_100] : memref<6x320xf32, #tpu.memory_space<vmem>>, vector<6x64xf32>
    tpu.vector_store %arg20[%c0_99, %c128_100], %116 {strides = array<i32>} : memref<6x320xf32, #tpu.memory_space<vmem>>, vector<6x64xf32>,
    %118 = vector.extract_strided_slice %111 {offsets = [3, 0], sizes = [6, 64], strides = [1, 1]} : vector<10x64xf32> to vector<6x64xf32>
    %c0_101 = arith.constant 0 : index
    %c192_102 = arith.constant 192 : index
    %119 = vector.load %arg20[%c0_101, %c192_102] : memref<6x320xf32, #tpu.memory_space<vmem>>, vector<6x64xf32>
    tpu.vector_store %arg20[%c0_101, %c192_102], %118 {strides = array<i32>} : memref<6x320xf32, #tpu.memory_space<vmem>>, vector<6x64xf32>,
    %120 = vector.extract_strided_slice %111 {offsets = [4, 0], sizes = [6, 64], strides = [1, 1]} : vector<10x64xf32> to vector<6x64xf32>
    %c0_103 = arith.constant 0 : index
    %c256_104 = arith.constant 256 : index
    %121 = vector.load %arg20[%c0_103, %c256_104] : memref<6x320xf32, #tpu.memory_space<vmem>>, vector<6x64xf32>
    tpu.vector_store %arg20[%c0_103, %c256_104], %120 {strides = array<i32>} : memref<6x320xf32, #tpu.memory_space<vmem>>, vector<6x64xf32>,
    %c0_105 = arith.constant 0 : index
    %c0_106 = arith.constant 0 : index
    %122 = vector.load %arg20[%c0_105, %c0_106] : memref<6x320xf32, #tpu.memory_space<vmem>>, vector<6x320xf32>
    %c0_107 = arith.constant 0 : index
    %c0_108 = arith.constant 0 : index
    %123 = vector.load %arg8[%c0_107, %c0_108] : memref<320x128xf32, #tpu.memory_space<vmem>>, vector<320x128xf32>
    %cst_109 = arith.constant dense<0.000000e+00> : vector<6x128xf32>
    %124 = tpu.matmul %122, %123, %cst_109 {dimension_numbers = #tpu.dot_dimension_numbers<[1], [0], [0], [1], [0, 0, 1, 1], [], []>} : vector<6x320xf32>, vector<320x128xf32>, vector<6x128xf32> -> vector<6x128xf32>
    %c0_110 = arith.constant 0 : index
    %c0_111 = arith.constant 0 : index
    %125 = vector.load %arg9[%c0_110, %c0_111] : memref<1x128xf32, #tpu.memory_space<vmem>>, vector<1x128xf32>
    %126 = vector.broadcast %125 : vector<1x128xf32> to vector<6x128xf32>
    %127 = arith.addf %124, %126 : vector<6x128xf32>
    %cst_112 = arith.constant 0.000000e+00 : f32
    %128 = vector.broadcast %cst_112 : f32 to vector<6x128xf32>
    %129 = arith.maximumf %127, %128 : vector<6x128xf32>
    %cst_113 = arith.constant dense<0.000000e+00> : vector<128xf32>
    %130 = vector.multi_reduction <add>, %129, %cst_113 [0] : vector<6x128xf32> to vector<128xf32>
    %131 = vector.shape_cast %130 : vector<128xf32> to vector<1x128xf32>
    %cst_114 = arith.constant 6.000000e+00 : f32
    %132 = vector.broadcast %cst_114 : f32 to vector<1x128xf32>
    %133 = arith.divf %131, %132 : vector<1x128xf32>
    %c0_115 = arith.constant 0 : index
    %c0_116 = arith.constant 0 : index
    %134 = vector.load %arg10[%c0_115, %c0_116] : memref<128x64xf32, #tpu.memory_space<vmem>>, vector<128x64xf32>
    %cst_117 = arith.constant dense<0.000000e+00> : vector<1x64xf32>
    %135 = tpu.matmul %133, %134, %cst_117 {dimension_numbers = #tpu.dot_dimension_numbers<[1], [0], [0], [1], [0, 0, 1, 1], [], []>} : vector<1x128xf32>, vector<128x64xf32>, vector<1x64xf32> -> vector<1x64xf32>
    %c0_118 = arith.constant 0 : index
    %c0_119 = arith.constant 0 : index
    %136 = vector.load %arg11[%c0_118, %c0_119] : memref<1x64xf32, #tpu.memory_space<vmem>>, vector<1x64xf32>
    %137 = arith.addf %135, %136 : vector<1x64xf32>
    %cst_120 = arith.constant 0.000000e+00 : f32
    %138 = vector.broadcast %cst_120 : f32 to vector<1x64xf32>
    %139 = arith.maximumf %137, %138 : vector<1x64xf32>
    %c0_121 = arith.constant 0 : index
    %c0_122 = arith.constant 0 : index
    %140 = vector.load %arg12[%c0_121, %c0_122] : memref<1x64xf32, #tpu.memory_space<vmem>>, vector<1x64xf32>
    %141 = arith.mulf %139, %140 : vector<1x64xf32>
    %cst_123 = arith.constant dense<0.000000e+00> : vector<1xf32>
    %142 = vector.multi_reduction <add>, %141, %cst_123 [1] : vector<1x64xf32> to vector<1xf32>
    %143 = vector.shape_cast %142 : vector<1xf32> to vector<1x1xf32>
    %c0_124 = arith.constant 0 : index
    %c0_125 = arith.constant 0 : index
    %144 = vector.load %arg13[%c0_124, %c0_125] : memref<1x1xf32, #tpu.memory_space<vmem>>, vector<1x1xf32>
    %145 = arith.addf %143, %144 : vector<1x1xf32>
    %cst_126 = arith.constant 0.000000e+00 : f32
    %146 = vector.broadcast %cst_126 : f32 to vector<1x1xf32>
    %147 = arith.subf %146, %145 : vector<1x1xf32>
    %148 = math.exp %147 : vector<1x1xf32>
    %cst_127 = arith.constant 1.000000e+00 : f32
    %149 = vector.broadcast %cst_127 : f32 to vector<1x1xf32>
    %150 = arith.addf %149, %148 : vector<1x1xf32>
    %cst_128 = arith.constant 1.000000e+00 : f32
    %151 = vector.broadcast %cst_128 : f32 to vector<1x1xf32>
    %152 = arith.divf %151, %150 : vector<1x1xf32>
    %153 = vector.shape_cast %152 : vector<1x1xf32> to vector<1x1x1xf32>
    %154 = vector.shape_cast %153 : vector<1x1x1xf32> to vector<1x1x1xf32>
    %155 = vector.broadcast %154 : vector<1x1x1xf32> to vector<1x1x128xf32>
    %c0_129 = arith.constant 0 : index
    %c0_130 = arith.constant 0 : index
    %c0_131 = arith.constant 0 : index
    %156 = vector.load %arg14[%c0_129, %c0_130, %c0_131] : memref<1x1x128xf32, #tpu.memory_space<vmem>>, vector<1x1x128xf32>
    tpu.vector_store %arg14[%c0_129, %c0_130, %c0_131], %155 {strides = array<i32>} : memref<1x1x128xf32, #tpu.memory_space<vmem>>, vector<1x1x128xf32>,
    return
  }
  func.func @transform_0(%arg0: i32) -> (i32, i32, i32) {
    %c0_i32 = arith.constant 0 : i32
    %c0_i32_0 = arith.constant 0 : i32
    %c0_i32_1 = arith.constant 0 : i32
    return %arg0, %c0_i32, %c0_i32_0 : i32, i32, i32
  }
  func.func @transform_1(%arg0: i32) -> (i32, i32) {
    %c0_i32 = arith.constant 0 : i32
    %c0_i32_0 = arith.constant 0 : i32
    %c0_i32_1 = arith.constant 0 : i32
    return %c0_i32, %c0_i32_0 : i32, i32
  }
  func.func @transform_2(%arg0: i32) -> (i32, i32) {
    %c0_i32 = arith.constant 0 : i32
    %c0_i32_0 = arith.constant 0 : i32
    %c0_i32_1 = arith.constant 0 : i32
    return %c0_i32, %c0_i32_0 : i32, i32
  }
  func.func @transform_3(%arg0: i32) -> (i32, i32) {
    %c0_i32 = arith.constant 0 : i32
    %c0_i32_0 = arith.constant 0 : i32
    %c0_i32_1 = arith.constant 0 : i32
    return %c0_i32, %c0_i32_0 : i32, i32
  }
  func.func @transform_4(%arg0: i32) -> (i32, i32) {
    %c0_i32 = arith.constant 0 : i32
    %c0_i32_0 = arith.constant 0 : i32
    %c0_i32_1 = arith.constant 0 : i32
    return %c0_i32, %c0_i32_0 : i32, i32
  }
  func.func @transform_5(%arg0: i32) -> (i32, i32) {
    %c0_i32 = arith.constant 0 : i32
    %c0_i32_0 = arith.constant 0 : i32
    %c0_i32_1 = arith.constant 0 : i32
    return %c0_i32, %c0_i32_0 : i32, i32
  }
  func.func @transform_6(%arg0: i32) -> (i32, i32) {
    %c0_i32 = arith.constant 0 : i32
    %c0_i32_0 = arith.constant 0 : i32
    %c0_i32_1 = arith.constant 0 : i32
    return %c0_i32, %c0_i32_0 : i32, i32
  }
  func.func @transform_7(%arg0: i32) -> (i32, i32) {
    %c0_i32 = arith.constant 0 : i32
    %c0_i32_0 = arith.constant 0 : i32
    %c0_i32_1 = arith.constant 0 : i32
    return %c0_i32, %c0_i32_0 : i32, i32
  }
  func.func @transform_8(%arg0: i32) -> (i32, i32) {
    %c0_i32 = arith.constant 0 : i32
    %c0_i32_0 = arith.constant 0 : i32
    %c0_i32_1 = arith.constant 0 : i32
    return %c0_i32, %c0_i32_0 : i32, i32
  }
  func.func @transform_9(%arg0: i32) -> (i32, i32) {
    %c0_i32 = arith.constant 0 : i32
    %c0_i32_0 = arith.constant 0 : i32
    %c0_i32_1 = arith.constant 0 : i32
    return %c0_i32, %c0_i32_0 : i32, i32
  }
  func.func @transform_10(%arg0: i32) -> (i32, i32) {
    %c0_i32 = arith.constant 0 : i32
    %c0_i32_0 = arith.constant 0 : i32
    %c0_i32_1 = arith.constant 0 : i32
    return %c0_i32, %c0_i32_0 : i32, i32
  }
  func.func @transform_11(%arg0: i32) -> (i32, i32) {
    %c0_i32 = arith.constant 0 : i32
    %c0_i32_0 = arith.constant 0 : i32
    %c0_i32_1 = arith.constant 0 : i32
    return %c0_i32, %c0_i32_0 : i32, i32
  }
  func.func @transform_12(%arg0: i32) -> (i32, i32) {
    %c0_i32 = arith.constant 0 : i32
    %c0_i32_0 = arith.constant 0 : i32
    %c0_i32_1 = arith.constant 0 : i32
    return %c0_i32, %c0_i32_0 : i32, i32
  }
  func.func @transform_13(%arg0: i32) -> (i32, i32, i32) {
    %c0_i32 = arith.constant 0 : i32
    %c0_i32_0 = arith.constant 0 : i32
    %c0_i32_1 = arith.constant 0 : i32
    return %arg0, %c0_i32, %c0_i32_0 : i32, i32, i32
  }
}

</mosaic_0001>

<llo_original>
// kernel: cnn_forward_pallas.1
$region0: #{cnn_forward_pallas.1}
  #allocation0 [shape = 'u32[]', space=smem, size = 0x4, offset = 0x4, fixed_abs, tag = 'smem constant byte address 0x4 - core index']
  #allocation1 [shape = 'u32[72,128]{1,0:T(1,128)}', space=vmem, size = 0x9000, scoped, tag = 'internal scratch']
  #allocation2 [shape = 'f32[136,16]{1,0:T(8,128)}', space=vmem, size = 0x11000, scoped, tag = 'scratch operand']
  #allocation3 [shape = 'f32[48,32]{1,0:T(8,128)}', space=vmem, size = 0x6000, scoped, tag = 'scratch operand']
  #allocation4 [shape = 'f32[24,64]{1,0:T(8,128)}', space=vmem, size = 0x3000, scoped, tag = 'scratch operand']
  #allocation5 [shape = 'f32[22,320]{1,0:T(8,128)}', space=vmem, size = 0x9000, scoped, tag = 'scratch operand']
  #allocation6 [shape = 'f32[12,320]{1,0:T(8,128)}', space=vmem, size = 0x6000, scoped, tag = 'scratch operand']
  #allocation7 [shape = 'f32[6,320]{1,0:T(8,128)}', space=vmem, size = 0x3000, scoped, tag = 'scratch operand']
  #allocation8 [shape = 'f32[1,1]{1,0:T(1,128)S(1)}', space=vmem, size = 0x200, scoped, tag = 'scoped memory for cnn_forward_pallas.1']
  %s0 = inlined_call_operand.vmem [shape: f32[2,86,50], index: 0, kind: input, shape index: {}]
  %s1 = inlined_call_operand.vmem [shape: f32[50,16], index: 1, kind: input, shape index: {}]
  %s2 = inlined_call_operand.vmem [shape: f32[1,16], index: 2, kind: input, shape index: {}]
  %s3 = inlined_call_operand.vmem [shape: f32[320,32], index: 3, kind: input, shape index: {}]
  %s4 = inlined_call_operand.vmem [shape: f32[1,32], index: 4, kind: input, shape index: {}]
  %s5 = inlined_call_operand.vmem [shape: f32[320,64], index: 5, kind: input, shape index: {}]
  %s6 = inlined_call_operand.vmem [shape: f32[1,64], index: 6, kind: input, shape index: {}]
  %s7 = inlined_call_operand.vmem [shape: f32[320,128], index: 7, kind: input, shape index: {}]
  %s8 = inlined_call_operand.vmem [shape: f32[1,128], index: 8, kind: input, shape index: {}]
  %s9 = inlined_call_operand.vmem [shape: f32[128,64], index: 9, kind: input, shape index: {}]
  %s10 = inlined_call_operand.vmem [shape: f32[1,64], index: 10, kind: input, shape index: {}]
  %s11 = inlined_call_operand.vmem [shape: f32[1,64], index: 11, kind: input, shape index: {}]
  %s12 = inlined_call_operand.<no memory space> [shape: f32[1,1], index: 12, kind: input, shape index: {}]
  %s13 = inlined_call_operand.vmem [shape: f32[2,1,128], index: 13, kind: output, shape index: {}]
  %s14 = sld [smem:[#allocation0]]
  $region85: #{cnn_forward_pallas.1} parent=0
    _
  %s16 = ssub.s32 1, %s14
  %s17 = scalar_select 0, %s16, %s14
  %v18 = vstv %s12
  %19 = vst [vmem:[#allocation8] sm:$0x1] %v18
  loop: start=0, step=1, limit=4
  $region2: #{cnn_forward_pallas.1} parent=0 // loop_pre_header
    _
  $region3: #{cnn_forward_pallas.1} parent=0 // loop_header
    %s21 = sphi 0, %s25
    %p22 = scmp.ge.s32.totalorder %s21, 4
    %s31 = sphi 0, %s33
    %s34 = sphi 0, %s31
    %s35 = sphi 0, %s34
    %s51 = sphi 0, %s35
    %s55 = sphi 0, %s55
    %s57 = sphi 0, %s55
    %s58 = sphi 0, %s57
    %s72 = sphi 0, %s58
    %s76 = sphi 0, %s76
    %s78 = sphi 0, %s76
    %s79 = sphi 0, %s78
    %s93 = sphi 0, %s79
    %s97 = sphi 0, %s97
    %s99 = sphi 0, %s97
    %s100 = sphi 0, %s99
    %s114 = sphi 0, %s100
    %s118 = sphi 0, %s118
    %s120 = sphi 0, %s118
    %s121 = sphi 0, %s120
    %s135 = sphi 0, %s121
    %s139 = sphi 0, %s139
    %s141 = sphi 0, %s139
    %s142 = sphi 0, %s141
    %s156 = sphi 0, %s142
    %s160 = sphi 0, %s160
    %s162 = sphi 0, %s160
    %s163 = sphi 0, %s162
    %s177 = sphi 0, %s163
    %s181 = sphi 0, %s181
    %s183 = sphi 0, %s181
    %s184 = sphi 0, %s183
    %s198 = sphi 0, %s184
    %s202 = sphi 0, %s202
    %s204 = sphi 0, %s202
    %s205 = sphi 0, %s204
    %s219 = sphi 0, %s205
    %s223 = sphi 0, %s223
    %s225 = sphi 0, %s223
    %s226 = sphi 0, %s225
    %s240 = sphi 0, %s226
    %s244 = sphi 0, %s244
    %s246 = sphi 0, %s244
    %s247 = sphi 0, %s246
    %s261 = sphi 0, %s247
    %s265 = sphi 0, %s265
    %s267 = sphi 0, %s265
    %s268 = sphi 0, %s267
    %s282 = sphi 0, %s268
    %s286 = sphi 0, %s286
    %s288 = sphi 0, %s286
    %s289 = sphi 0, %s288
    %s303 = sphi 0, %s289
    %s309 = sphi 0, %s311
    %s312 = sphi 0, %s309
    %s313 = sphi 0, %s312
    %s329 = sphi 0, %s313
  $region4: #{cnn_forward_pallas.1} parent=0 // loop_header_branch
    %24 = sbr.rel (%p22) target = $region8
  $region5: #{cnn_forward_pallas.1} parent=0 // loop_body
    %s26 = ssub.s32 %s21, 1
    %s27 = ssub.s32 %s21, 2
    %s28 = sadd.s32 %s21, 1
    %s29 = ssub.s32 %s21, %s28
    %p30 = scmp.eq.s32.totalorder %s29, 0
    %s32 = sadd.s32 %s31, 1
    %s33 = scalar_select %p30, %s31, %s32
    %p36 = pneg %p30
    %p37 = scmp.eq.s32.totalorder %s21, 1
    %p38 = por %p36, %p37
    %p39 = scmp.ne.s32.totalorder %s31, %s34
    %p40 = scmp.eq.s32.totalorder %s21, 0
    %p41 = por %p39, %p40
    %p42 = scmp.ne.s32.totalorder %s31, %s34
    %p43 = scmp.eq.s32.totalorder %s26, 1
    %p44 = por %p42, %p43
    %p45 = scmp.ne.s32.totalorder %s34, %s35
    %p46 = scmp.eq.s32.totalorder %s26, 0
    %p47 = por %p45, %p46
    %p48 = scmp.ne.s32.totalorder %s34, %s35
    %p49 = scmp.eq.s32.totalorder %s27, 1
    %p50 = por %p48, %p49
    %p52 = scmp.ne.s32.totalorder %s35, %s51
    %p53 = scmp.eq.s32.totalorder %s27, 0
    %p54 = por %p52, %p53
    %s56 = sadd.s32 %s55, 1
    %p59 = scmp.eq.s32.totalorder %s21, 1
    %p60 = scmp.ne.s32.totalorder %s55, %s57
    %p61 = scmp.eq.s32.totalorder %s21, 0
    %p62 = por %p60, %p61
    %p63 = scmp.ne.s32.totalorder %s55, %s57
    %p64 = scmp.eq.s32.totalorder %s26, 1
    %p65 = por %p63, %p64
    %p66 = scmp.ne.s32.totalorder %s57, %s58
    %p67 = scmp.eq.s32.totalorder %s26, 0
    %p68 = por %p66, %p67
    %p69 = scmp.ne.s32.totalorder %s57, %s58
    %p70 = scmp.eq.s32.totalorder %s27, 1
    %p71 = por %p69, %p70
    %p73 = scmp.ne.s32.totalorder %s58, %s72
    %p74 = scmp.eq.s32.totalorder %s27, 0
    %p75 = por %p73, %p74
    %s77 = sadd.s32 %s76, 1
    %p80 = scmp.eq.s32.totalorder %s21, 1
    %p81 = scmp.ne.s32.totalorder %s76, %s78
    %p82 = scmp.eq.s32.totalorder %s21, 0
    %p83 = por %p81, %p82
    %p84 = scmp.ne.s32.totalorder %s76, %s78
    %p85 = scmp.eq.s32.totalorder %s26, 1
    %p86 = por %p84, %p85
    %p87 = scmp.ne.s32.totalorder %s78, %s79
    %p88 = scmp.eq.s32.totalorder %s26, 0
    %p89 = por %p87, %p88
    %p90 = scmp.ne.s32.totalorder %s78, %s79
    %p91 = scmp.eq.s32.totalorder %s27, 1
    %p92 = por %p90, %p91
    %p94 = scmp.ne.s32.totalorder %s79, %s93
    %p95 = scmp.eq.s32.totalorder %s27, 0
    %p96 = por %p94, %p95
    %s98 = sadd.s32 %s97, 1
    %p101 = scmp.eq.s32.totalorder %s21, 1
    %p102 = scmp.ne.s32.totalorder %s97, %s99
    %p103 = scmp.eq.s32.totalorder %s21, 0
    %p104 = por %p102, %p103
    %p105 = scmp.ne.s32.totalorder %s97, %s99
    %p106 = scmp.eq.s32.totalorder %s26, 1
    %p107 = por %p105, %p106
    %p108 = scmp.ne.s32.totalorder %s99, %s100
    %p109 = scmp.eq.s32.totalorder %s26, 0
    %p110 = por %p108, %p109
    %p111 = scmp.ne.s32.totalorder %s99, %s100
    %p112 = scmp.eq.s32.totalorder %s27, 1
    %p113 = por %p111, %p112
    %p115 = scmp.ne.s32.totalorder %s100, %s114
    %p116 = scmp.eq.s32.totalorder %s27, 0
    %p117 = por %p115, %p116
    %s119 = sadd.s32 %s118, 1
    %p122 = scmp.eq.s32.totalorder %s21, 1
    %p123 = scmp.ne.s32.totalorder %s118, %s120
    %p124 = scmp.eq.s32.totalorder %s21, 0
    %p125 = por %p123, %p124
    %p126 = scmp.ne.s32.totalorder %s118, %s120
    %p127 = scmp.eq.s32.totalorder %s26, 1
    %p128 = por %p126, %p127
    %p129 = scmp.ne.s32.totalorder %s120, %s121
    %p130 = scmp.eq.s32.totalorder %s26, 0
    %p131 = por %p129, %p130
    %p132 = scmp.ne.s32.totalorder %s120, %s121
    %p133 = scmp.eq.s32.totalorder %s27, 1
    %p134 = por %p132, %p133
    %p136 = scmp.ne.s32.totalorder %s121, %s135
    %p137 = scmp.eq.s32.totalorder %s27, 0
    %p138 = por %p136, %p137
    %s140 = sadd.s32 %s139, 1
    %p143 = scmp.eq.s32.totalorder %s21, 1
    %p144 = scmp.ne.s32.totalorder %s139, %s141
    %p145 = scmp.eq.s32.totalorder %s21, 0
    %p146 = por %p144, %p145
    %p147 = scmp.ne.s32.totalorder %s139, %s141
    %p148 = scmp.eq.s32.totalorder %s26, 1
    %p149 = por %p147, %p148
    %p150 = scmp.ne.s32.totalorder %s141, %s142
    %p151 = scmp.eq.s32.totalorder %s26, 0
    %p152 = por %p150, %p151
    %p153 = scmp.ne.s32.totalorder %s141, %s142
    %p154 = scmp.eq.s32.totalorder %s27, 1
    %p155 = por %p153, %p154
    %p157 = scmp.ne.s32.totalorder %s142, %s156
    %p158 = scmp.eq.s32.totalorder %s27, 0
    %p159 = por %p157, %p158
    %s161 = sadd.s32 %s160, 1
    %p164 = scmp.eq.s32.totalorder %s21, 1
    %p165 = scmp.ne.s32.totalorder %s160, %s162
    %p166 = scmp.eq.s32.totalorder %s21, 0
    %p167 = por %p165, %p166
    %p168 = scmp.ne.s32.totalorder %s160, %s162
    %p169 = scmp.eq.s32.totalorder %s26, 1
    %p170 = por %p168, %p169
    %p171 = scmp.ne.s32.totalorder %s162, %s163
    %p172 = scmp.eq.s32.totalorder %s26, 0
    %p173 = por %p171, %p172
    %p174 = scmp.ne.s32.totalorder %s162, %s163
    %p175 = scmp.eq.s32.totalorder %s27, 1
    %p176 = por %p174, %p175
    %p178 = scmp.ne.s32.totalorder %s163, %s177
    %p179 = scmp.eq.s32.totalorder %s27, 0
    %p180 = por %p178, %p179
    %s182 = sadd.s32 %s181, 1
    %p185 = scmp.eq.s32.totalorder %s21, 1
    %p186 = scmp.ne.s32.totalorder %s181, %s183
    %p187 = scmp.eq.s32.totalorder %s21, 0
    %p188 = por %p186, %p187
    %p189 = scmp.ne.s32.totalorder %s181, %s183
    %p190 = scmp.eq.s32.totalorder %s26, 1
    %p191 = por %p189, %p190
    %p192 = scmp.ne.s32.totalorder %s183, %s184
    %p193 = scmp.eq.s32.totalorder %s26, 0
    %p194 = por %p192, %p193
    %p195 = scmp.ne.s32.totalorder %s183, %s184
    %p196 = scmp.eq.s32.totalorder %s27, 1
    %p197 = por %p195, %p196
    %p199 = scmp.ne.s32.totalorder %s184, %s198
    %p200 = scmp.eq.s32.totalorder %s27, 0
    %p201 = por %p199, %p200
    %s203 = sadd.s32 %s202, 1
    %p206 = scmp.eq.s32.totalorder %s21, 1
    %p207 = scmp.ne.s32.totalorder %s202, %s204
    %p208 = scmp.eq.s32.totalorder %s21, 0
    %p209 = por %p207, %p208
    %p210 = scmp.ne.s32.totalorder %s202, %s204
    %p211 = scmp.eq.s32.totalorder %s26, 1
    %p212 = por %p210, %p211
    %p213 = scmp.ne.s32.totalorder %s204, %s205
    %p214 = scmp.eq.s32.totalorder %s26, 0
    %p215 = por %p213, %p214
    %p216 = scmp.ne.s32.totalorder %s204, %s205
    %p217 = scmp.eq.s32.totalorder %s27, 1
    %p218 = por %p216, %p217
    %p220 = scmp.ne.s32.totalorder %s205, %s219
    %p221 = scmp.eq.s32.totalorder %s27, 0
    %p222 = por %p220, %p221
    %s224 = sadd.s32 %s223, 1
    %p227 = scmp.eq.s32.totalorder %s21, 1
    %p228 = scmp.ne.s32.totalorder %s223, %s225
    %p229 = scmp.eq.s32.totalorder %s21, 0
    %p230 = por %p228, %p229
    %p231 = scmp.ne.s32.totalorder %s223, %s225
    %p232 = scmp.eq.s32.totalorder %s26, 1
    %p233 = por %p231, %p232
    %p234 = scmp.ne.s32.totalorder %s225, %s226
    %p235 = scmp.eq.s32.totalorder %s26, 0
    %p236 = por %p234, %p235
    %p237 = scmp.ne.s32.totalorder %s225, %s226
    %p238 = scmp.eq.s32.totalorder %s27, 1
    %p239 = por %p237, %p238
    %p241 = scmp.ne.s32.totalorder %s226, %s240
    %p242 = scmp.eq.s32.totalorder %s27, 0
    %p243 = por %p241, %p242
    %s245 = sadd.s32 %s244, 1
    %p248 = scmp.eq.s32.totalorder %s21, 1
    %p249 = scmp.ne.s32.totalorder %s244, %s246
    %p250 = scmp.eq.s32.totalorder %s21, 0
    %p251 = por %p249, %p250
    %p252 = scmp.ne.s32.totalorder %s244, %s246
    %p253 = scmp.eq.s32.totalorder %s26, 1
    %p254 = por %p252, %p253
    %p255 = scmp.ne.s32.totalorder %s246, %s247
    %p256 = scmp.eq.s32.totalorder %s26, 0
    %p257 = por %p255, %p256
    %p258 = scmp.ne.s32.totalorder %s246, %s247
    %p259 = scmp.eq.s32.totalorder %s27, 1
    %p260 = por %p258, %p259
    %p262 = scmp.ne.s32.totalorder %s247, %s261
    %p263 = scmp.eq.s32.totalorder %s27, 0
    %p264 = por %p262, %p263
    %s266 = sadd.s32 %s265, 1
    %p269 = scmp.eq.s32.totalorder %s21, 1
    %p270 = scmp.ne.s32.totalorder %s265, %s267
    %p271 = scmp.eq.s32.totalorder %s21, 0
    %p272 = por %p270, %p271
    %p273 = scmp.ne.s32.totalorder %s265, %s267
    %p274 = scmp.eq.s32.totalorder %s26, 1
    %p275 = por %p273, %p274
    %p276 = scmp.ne.s32.totalorder %s267, %s268
    %p277 = scmp.eq.s32.totalorder %s26, 0
    %p278 = por %p276, %p277
    %p279 = scmp.ne.s32.totalorder %s267, %s268
    %p280 = scmp.eq.s32.totalorder %s27, 1
    %p281 = por %p279, %p280
    %p283 = scmp.ne.s32.totalorder %s268, %s282
    %p284 = scmp.eq.s32.totalorder %s27, 0
    %p285 = por %p283, %p284
    %s287 = sadd.s32 %s286, 1
    %p290 = scmp.eq.s32.totalorder %s21, 1
    %p291 = scmp.ne.s32.totalorder %s286, %s288
    %p292 = scmp.eq.s32.totalorder %s21, 0
    %p293 = por %p291, %p292
    %p294 = scmp.ne.s32.totalorder %s286, %s288
    %p295 = scmp.eq.s32.totalorder %s26, 1
    %p296 = por %p294, %p295
    %p297 = scmp.ne.s32.totalorder %s288, %s289
    %p298 = scmp.eq.s32.totalorder %s26, 0
    %p299 = por %p297, %p298
    %p300 = scmp.ne.s32.totalorder %s288, %s289
    %p301 = scmp.eq.s32.totalorder %s27, 1
    %p302 = por %p300, %p301
    %p304 = scmp.ne.s32.totalorder %s289, %s303
    %p305 = scmp.eq.s32.totalorder %s27, 0
    %p306 = por %p304, %p305
    %s307 = ssub.s32 %s21, %s28
    %p308 = scmp.eq.s32.totalorder %s307, 0
    %s310 = sadd.s32 %s309, 1
    %s311 = scalar_select %p308, %s309, %s310
    %p314 = pneg %p308
    %p315 = scmp.eq.s32.totalorder %s21, 1
    %p316 = por %p314, %p315
    %p317 = scmp.ne.s32.totalorder %s309, %s312
    %p318 = scmp.eq.s32.totalorder %s21, 0
    %p319 = por %p317, %p318
    %p320 = scmp.ne.s32.totalorder %s309, %s312
    %p321 = scmp.eq.s32.totalorder %s26, 1
    %p322 = por %p320, %p321
    %p323 = scmp.ne.s32.totalorder %s312, %s313
    %p324 = scmp.eq.s32.totalorder %s26, 0
    %p325 = por %p323, %p324
    %p326 = scmp.ne.s32.totalorder %s312, %s313
    %p327 = scmp.eq.s32.totalorder %s27, 1
    %p328 = por %p326, %p327
    %p330 = scmp.ne.s32.totalorder %s313, %s329
    %p331 = scmp.eq.s32.totalorder %s27, 0
    %p332 = por %p330, %p331
    %p333 = scmp.le.s32.totalorder 1, %s21
    %p334 = scmp.lt.s32.totalorder %s21, 3
    %p335 = pnand %p333, %p334
    %p336 = pneg %p335
    // Predicated region
    $region9: #{cnn_forward_pallas.1} parent=5 // pred_check
      _
    $region10: #{cnn_forward_pallas.1} parent=5 // pred_check_branch
      %338 = sbr.rel (%p335) target = $region12
    $region11: #{cnn_forward_pallas.1} parent=5 // pred_region
      %s339 = ssub.s32 %s21, 1
      // Predicated region
      $region13: #{cnn_forward_pallas.1} parent=11 // pred_check
        %p340 = pneg %p68
      $region14: #{cnn_forward_pallas.1} parent=11 // pred_check_branch
        %342 = sbr.rel (%p340) target = $region16
      $region15: #{cnn_forward_pallas.1} parent=11 // pred_region
        _
      $region16: #{cnn_forward_pallas.1} parent=11 // pred_fallthru
        _
      // Predicated region
      $region17: #{cnn_forward_pallas.1} parent=11 // pred_check
        %p343 = pneg %p89
      $region18: #{cnn_forward_pallas.1} parent=11 // pred_check_branch
        %345 = sbr.rel (%p343) target = $region20
      $region19: #{cnn_forward_pallas.1} parent=11 // pred_region
        _
      $region20: #{cnn_forward_pallas.1} parent=11 // pred_fallthru
        _
      // Predicated region
      $region21: #{cnn_forward_pallas.1} parent=11 // pred_check
        %p346 = pneg %p110
      $region22: #{cnn_forward_pallas.1} parent=11 // pred_check_branch
        %348 = sbr.rel (%p346) target = $region24
      $region23: #{cnn_forward_pallas.1} parent=11 // pred_region
        _
      $region24: #{cnn_forward_pallas.1} parent=11 // pred_fallthru
        _
      // Predicated region
      $region25: #{cnn_forward_pallas.1} parent=11 // pred_check
        %p349 = pneg %p131
      $region26: #{cnn_forward_pallas.1} parent=11 // pred_check_branch
        %351 = sbr.rel (%p349) target = $region28
      $region27: #{cnn_forward_pallas.1} parent=11 // pred_region
        _
      $region28: #{cnn_forward_pallas.1} parent=11 // pred_fallthru
        _
      // Predicated region
      $region29: #{cnn_forward_pallas.1} parent=11 // pred_check
        %p352 = pneg %p152
      $region30: #{cnn_forward_pallas.1} parent=11 // pred_check_branch
        %354 = sbr.rel (%p352) target = $region32
      $region31: #{cnn_forward_pallas.1} parent=11 // pred_region
        _
      $region32: #{cnn_forward_pallas.1} parent=11 // pred_fallthru
        _
      // Predicated region
      $region33: #{cnn_forward_pallas.1} parent=11 // pred_check
        %p355 = pneg %p173
      $region34: #{cnn_forward_pallas.1} parent=11 // pred_check_branch
        %357 = sbr.rel (%p355) target = $region36
      $region35: #{cnn_forward_pallas.1} parent=11 // pred_region
        _
      $region36: #{cnn_forward_pallas.1} parent=11 // pred_fallthru
        _
      // Predicated region
      $region37: #{cnn_forward_pallas.1} parent=11 // pred_check
        %p358 = pneg %p194
      $region38: #{cnn_forward_pallas.1} parent=11 // pred_check_branch
        %360 = sbr.rel (%p358) target = $region40
      $region39: #{cnn_forward_pallas.1} parent=11 // pred_region
        _
      $region40: #{cnn_forward_pallas.1} parent=11 // pred_fallthru
        _
      // Predicated region
      $region41: #{cnn_forward_pallas.1} parent=11 // pred_check
        %p361 = pneg %p215
      $region42: #{cnn_forward_pallas.1} parent=11 // pred_check_branch
        %363 = sbr.rel (%p361) target = $region44
      $region43: #{cnn_forward_pallas.1} parent=11 // pred_region
        _
      $region44: #{cnn_forward_pallas.1} parent=11 // pred_fallthru
        _
      // Predicated region
      $region45: #{cnn_forward_pallas.1} parent=11 // pred_check
        %p364 = pneg %p236
      $region46: #{cnn_forward_pallas.1} parent=11 // pred_check_branch
        %366 = sbr.rel (%p364) target = $region48
      $region47: #{cnn_forward_pallas.1} parent=11 // pred_region
        _
      $region48: #{cnn_forward_pallas.1} parent=11 // pred_fallthru
        _
      // Predicated region
      $region49: #{cnn_forward_pallas.1} parent=11 // pred_check
        %p367 = pneg %p257
      $region50: #{cnn_forward_pallas.1} parent=11 // pred_check_branch
        %369 = sbr.rel (%p367) target = $region52
      $region51: #{cnn_forward_pallas.1} parent=11 // pred_region
        _
      $region52: #{cnn_forward_pallas.1} parent=11 // pred_fallthru
        _
      // Predicated region
      $region53: #{cnn_forward_pallas.1} parent=11 // pred_check
        %p370 = pneg %p278
      $region54: #{cnn_forward_pallas.1} parent=11 // pred_check_branch
        %372 = sbr.rel (%p370) target = $region56
      $region55: #{cnn_forward_pallas.1} parent=11 // pred_region
        _
      $region56: #{cnn_forward_pallas.1} parent=11 // pred_fallthru
        _
      // Predicated region
      $region57: #{cnn_forward_pallas.1} parent=11 // pred_check
        %p373 = pneg %p299
      $region58: #{cnn_forward_pallas.1} parent=11 // pred_check_branch
        %375 = sbr.rel (%p373) target = $region60
      $region59: #{cnn_forward_pallas.1} parent=11 // pred_region
        _
      $region60: #{cnn_forward_pallas.1} parent=11 // pred_fallthru
        _
    $region12: #{cnn_forward_pallas.1} parent=5 // pred_fallthru
      _
    %p376 = scmp.lt.s32.totalorder %s21, 2
    // Predicated region
    $region61: #{cnn_forward_pallas.1} parent=5 // pred_check
      %p377 = pneg %p376
    $region62: #{cnn_forward_pallas.1} parent=5 // pred_check_branch
      %379 = sbr.rel (%p377) target = $region64
    $region63: #{cnn_forward_pallas.1} parent=5 // pred_region
      // Predicated region
      $region65: #{cnn_forward_pallas.1} parent=63 // pred_check
        %p380 = pneg %p41
      $region66: #{cnn_forward_pallas.1} parent=63 // pred_check_branch
        %382 = sbr.rel (%p380) target = $region68
      $region67: #{cnn_forward_pallas.1} parent=63 // pred_region
        %p383 = scmp.lt.s32.totalorder %s21, 1
        %s384 = scalar_select %p383, %s21, 1
        %s385 = smul.addr %s384, 11
        %s386 = smul.addr %s385, 8
        %s387 = scalar_lea.vmem %s0, %s386
      $region68: #{cnn_forward_pallas.1} parent=63 // pred_fallthru
        _
    $region64: #{cnn_forward_pallas.1} parent=5 // pred_fallthru
      _
    %p388 = scmp.le.s32.totalorder 1, %s21
    %p389 = scmp.lt.s32.totalorder %s21, 3
    %p390 = pnand %p388, %p389
    %p391 = pneg %p390
    // Predicated region
    $region69: #{cnn_forward_pallas.1} parent=5 // pred_check
      _
    $region70: #{cnn_forward_pallas.1} parent=5 // pred_check_branch
      %393 = sbr.rel (%p390) target = $region72
    $region71: #{cnn_forward_pallas.1} parent=5 // pred_region
      %s394 = ssub.s32 %s21, 1
      %p395 = scmp.lt.s32.totalorder %s26, 1
      %s396 = scalar_select %p395, %s26, 1
      %s397 = smul.addr %s396, 11
      %s398 = smul.addr %s397, 8
      %s399 = scalar_lea.vmem %s0, %s398
      %p400 = pneg %p47
      %p401 = pneg %p44
      %p402 = pneg %p68
      %p403 = pneg %p65
      %p404 = pneg %p89
      %p405 = pneg %p86
      %p406 = pneg %p110
      %p407 = pneg %p107
      %p408 = pneg %p131
      %p409 = pneg %p128
      %p410 = pneg %p152
      %p411 = pneg %p149
      %p412 = pneg %p173
      %p413 = pneg %p170
      %p414 = pneg %p194
      %p415 = pneg %p191
      %p416 = pneg %p215
      %p417 = pneg %p212
      %p418 = pneg %p236
      %p419 = pneg %p233
      %p420 = pneg %p257
      %p421 = pneg %p254
      %p422 = pneg %p278
      %p423 = pneg %p275
      %p424 = pneg %p299
      %p425 = pneg %p296
      %p426 = pneg %p325
      %p427 = pneg %p322
      %p428 = scmp.lt.s32.totalorder %s26, 1
      %s429 = scalar_select %p428, %s26, 1
      %s430 = scalar_lea.vmem %s13, %s429
      %p431 = scmp.lt.s32.totalorder %s26, 1
      %s432 = scalar_select %p431, %s26, 1
      %s433 = smul.addr %s432, 11
      %s434 = smul.addr %s433, 8
      %s435 = scalar_lea.vmem %s0, %s434
      %p436 = scmp.lt.s32.totalorder %s26, 1
      %s437 = scalar_select %p436, %s26, 1
      %s438 = scalar_lea.vmem %s13, %s437
      %vm439 = vcmask 130048
      %440 = vst.msk [vmem:[#allocation2] sm:$0xff] %vm439, 0.0
      %441 = vst.msk [vmem:[#allocation2 + $0x8] sm:$0xff] %vm439, 0.0
      %442 = vst.msk [vmem:[#allocation2 + $0x10] sm:$0xff] %vm439, 0.0
      %443 = vst.msk [vmem:[#allocation2 + $0x6e] sm:$0xff] %vm439, 0.0
      %444 = vst.msk [vmem:[#allocation2 + $0x76] sm:$0xff] %vm439, 0.0
      %445 = vst.msk [vmem:[#allocation2 + $0x7e] sm:$0xff] %vm439, 0.0
      %vm446 = vcmask 123904
      %447 = vst.msk [vmem:[#allocation2 + $0x86] sm:$0x3] %vm446, 0.0
      %vm448 = vcmask 261120
      %449 = vst.msk [vmem:[#allocation3] sm:$0xff] %vm448, 0.0
      %450 = vst.msk [vmem:[#allocation3 + $0x8] sm:$0xff] %vm448, 0.0
      %451 = vst.msk [vmem:[#allocation3 + $0x26] sm:$0xff] %vm448, 0.0
      %vm452 = vcmask 254976
      %453 = vst.msk [vmem:[#allocation3 + $0x2e] sm:$0x3] %vm452, 0.0
      %vm454 = vcmask 523264
      %455 = vst.msk [vmem:[#allocation4] sm:$0xff] %vm454, 0.0
      %vm456 = vcmask 519168
      %457 = vst.msk [vmem:[#allocation4 + $0x14] sm:$0xf] %vm456, 0.0
      %v458 = vld [vmem:[%s435] sm:$0xff]
      %v459 = vld [vmem:[%s435 + $0x8] sm:$0xff]
      %v460 = vld [vmem:[%s435 + $0x10] sm:$0xff]
      %v461 = vld [vmem:[%s435 + $0x18] sm:$0xff]
      %v462 = vld [vmem:[%s435 + $0x20] sm:$0xff]
      %v463 = vld [vmem:[%s435 + $0x28] sm:$0xff]
      %v464 = vld [vmem:[%s435 + $0x30] sm:$0xff]
      %v465 = vld [vmem:[%s435 + $0x38] sm:$0xff]
      %v466 = vld [vmem:[%s435 + $0x40] sm:$0xff]
      %v467 = vld [vmem:[%s435 + $0x48] sm:$0xff]
      %v468 = vld [vmem:[%s435 + $0x50] sm:$0x3f]
      %v469 = vld [vmem:[%s1] sm:$0xff]
      %v470 = vld [vmem:[%s1 + $0x8] sm:$0xff]
      %v471 = vld [vmem:[%s1 + $0x10] sm:$0xff]
      %v472 = vld [vmem:[%s1 + $0x18] sm:$0xff]
      %v473 = vld [vmem:[%s1 + $0x20] sm:$0xff]
      %v474 = vld [vmem:[%s1 + $0x28] sm:$0xff]
      %v475 = vld [vmem:[%s1 + $0x30] sm:$0x3]
      %v476 = vld [vmem:[%s2] sm:$0x1]
      %v478 = vperm.slane %v476, 0
      %vm480 = vcmask 408576
      %v482 = vsel %vm480, %v458, 0
      %v485 = vsel %vm480, %v459, 0
      %v488 = vsel %vm480, %v460, 0
      %v491 = vsel %vm480, %v461, 0
      %v494 = vsel %vm480, %v462, 0
      %v497 = vsel %vm480, %v463, 0
      %v500 = vsel %vm480, %v464, 0
      %v503 = vsel %vm480, %v465, 0
      %v506 = vsel %vm480, %v466, 0
      %v509 = vsel %vm480, %v467, 0
      %v512 = vsel %vm480, %v468, 0
      %vm514 = vcmask 1041408
      %v516 = vsel %vm514, %v475, 0
      %518 = vmatpush.msra.mxu0 0.0
      %519 = vmatpush.msra.mxu0 0.0
      %520 = vmatpush.msra.mxu0 0.0
      %521 = vmatpush.msra.mxu0 0.0
      %522 = vmatpush.msra.mxu0 0.0
      %523 = vmatpush.msra.mxu0 0.0
      %524 = vmatpush.msra.mxu0 0.0
      %525 = vmatpush.msra.mxu0 0.0
      %526 = vmatpush.msra.mxu0 0.0
      %527 = vmatpush.msra.mxu0 %v516
      %528 = vmatpush.msra.mxu0 %v474
      %529 = vmatpush.msra.mxu0 %v473
      %530 = vmatpush.msra.mxu0 %v472
      %531 = vmatpush.msra.mxu0 %v471
      %532 = vmatpush.msra.mxu0 %v470
      %533 = vmatpush.msra.mxu0 %v469
      %534 = vmatmul.f32.gmra.mxu0 %v482
      %v535 = vpop.f32.mrf.mxu0
      %v536 = vadd.f32 %v478, %v535
      %537 = vmatmul.f32.gmra.mxu0 %v485
      %v538 = vpop.f32.mrf.mxu0
      %v539 = vadd.f32 %v478, %v538
      %540 = vmatmul.f32.gmra.mxu0 %v488
      %v541 = vpop.f32.mrf.mxu0
      %v542 = vadd.f32 %v478, %v541
      %543 = vmatmul.f32.gmra.mxu0 %v491
      %v544 = vpop.f32.mrf.mxu0
      %v545 = vadd.f32 %v478, %v544
      %546 = vmatmul.f32.gmra.mxu0 %v494
      %v547 = vpop.f32.mrf.mxu0
      %v548 = vadd.f32 %v478, %v547
      %549 = vmatmul.f32.gmra.mxu0 %v497
      %v550 = vpop.f32.mrf.mxu0
      %v551 = vadd.f32 %v478, %v550
      %552 = vmatmul.f32.gmra.mxu0 %v500
      %v553 = vpop.f32.mrf.mxu0
      %v554 = vadd.f32 %v478, %v553
      %555 = vmatmul.f32.gmra.mxu0 %v503
      %v556 = vpop.f32.mrf.mxu0
      %v557 = vadd.f32 %v478, %v556
      %558 = vmatmul.f32.gmra.mxu0 %v506
      %v559 = vpop.f32.mrf.mxu0
      %v560 = vadd.f32 %v478, %v559
      %561 = vmatmul.f32.gmra.mxu0 %v509
      %v562 = vpop.f32.mrf.mxu0
      %v563 = vadd.f32 %v478, %v562
      %564 = vmatmul.f32.gmra.mxu0 %v512
      %v565 = vpop.f32.mrf.mxu0
      %v566 = vadd.f32 %v478, %v565
      %567 = vdwg.mxu0
      %v568 = vmax.f32 %v536, 0.0
      %v569 = vmax.f32 %v539, 0.0
      %v570 = vmax.f32 %v542, 0.0
      %v571 = vmax.f32 %v545, 0.0
      %v572 = vmax.f32 %v548, 0.0
      %v573 = vmax.f32 %v551, 0.0
      %v574 = vmax.f32 %v554, 0.0
      %v575 = vmax.f32 %v557, 0.0
      %v576 = vmax.f32 %v560, 0.0
      %v577 = vmax.f32 %v563, 0.0
      %v578 = vmax.f32 %v566, 0.0
      %579 = vst.msk [vmem:[#allocation2 + $0x18] sm:$0xff] %vm439, %v568
      %580 = vst.msk [vmem:[#allocation2 + $0x20] sm:$0xff] %vm439, %v569
      %581 = vst.msk [vmem:[#allocation2 + $0x28] sm:$0xff] %vm439, %v570
      %582 = vst.msk [vmem:[#allocation2 + $0x30] sm:$0xff] %vm439, %v571
      %583 = vst.msk [vmem:[#allocation2 + $0x38] sm:$0xff] %vm439, %v572
      %584 = vst.msk [vmem:[#allocation2 + $0x40] sm:$0xff] %vm439, %v573
      %585 = vst.msk [vmem:[#allocation2 + $0x48] sm:$0xff] %vm439, %v574
      %586 = vst.msk [vmem:[#allocation2 + $0x50] sm:$0xff] %vm439, %v575
      %587 = vst.msk [vmem:[#allocation2 + $0x58] sm:$0xff] %vm439, %v576
      %588 = vst.msk [vmem:[#allocation2 + $0x60] sm:$0xff] %vm439, %v577
      %vm589 = vcmask 128000
      %590 = vst.msk [vmem:[#allocation2 + $0x68] sm:$0x3f] %vm589, %v578
      %s591 = scalar_lea.vmem [#allocation2], 4
      %v592 = vld [vmem:[%s591] ss:$4 sm:$0xff]
      %s593 = scalar_lea.vmem [#allocation2], 36
      %v594 = vld [vmem:[%s593] ss:$4 sm:$0xff]
      %s595 = scalar_lea.vmem [#allocation2], 68
      %v596 = vld [vmem:[%s595] ss:$4 sm:$0xff]
      %s597 = scalar_lea.vmem [#allocation2], 100
      %v598 = vld [vmem:[%s597] ss:$4 sm:$0x7f]
      %s599 = scalar_lea.vmem [#allocation2], 5
      %v600 = vld [vmem:[%s599] ss:$4 sm:$0xff]
      %s601 = scalar_lea.vmem [#allocation2], 37
      %v602 = vld [vmem:[%s601] ss:$4 sm:$0xff]
      %s603 = scalar_lea.vmem [#allocation2], 69
      %v604 = vld [vmem:[%s603] ss:$4 sm:$0xff]
      %s605 = scalar_lea.vmem [#allocation2], 101
      %v606 = vld [vmem:[%s605] ss:$4 sm:$0x7f]
      %v607 = vmax.f32 %v592, %v600
      %v608 = vmax.f32 %v594, %v602
      %v609 = vmax.f32 %v596, %v604
      %v610 = vmax.f32 %v598, %v606
      %611 = vst.msk [vmem:[#allocation5] sm:$0xff] %vm439, %v607
      %612 = vst.msk [vmem:[#allocation5 + $0x18] sm:$0xff] %vm439, %v608
      %613 = vst.msk [vmem:[#allocation5 + $0x30] sm:$0x3f] %vm589, %v609
      %vm617 = vcmask 1046528
      %v618 = vrot.slane %v607, 1
      %v619 = vrot.slane %v608, 1
      %v620 = vsel %vm617, %v618, %v619
      %v621 = vrot.slane %v609, 1
      %v622 = vsel %vm617, %v619, %v621
      %623 = vrot.lane.b32.xlu0 %v620, 32
      %v624 = vpop.permute.xlu0 %623
      %625 = vrot.lane.b32.xlu0 %v622, 32
      %v626 = vpop.permute.xlu0 %625
      %627 = vrot.lane.b32.xlu0 %v621, 32
      %v628 = vpop.permute.xlu0 %627
      %vm632 = vcmask 392448
      %633 = vst.msk [vmem:[#allocation5] sm:$0xff] %vm632, %v624
      %634 = vst.msk [vmem:[#allocation5 + $0x18] sm:$0xff] %vm632, %v626
      %vm635 = vcmask 390400
      %636 = vst.msk [vmem:[#allocation5 + $0x30] sm:$0x3f] %vm635, %v628
      %vm637 = vcmask 1045504
      %v638 = vrot.slane %v607, 2
      %v639 = vrot.slane %v608, 2
      %v640 = vsel %vm637, %v638, %v639
      %v641 = vrot.slane %v609, 2
      %v642 = vsel %vm637, %v639, %v641
      %643 = vrot.lane.b32.xlu0 %v640, 64
      %v644 = vpop.permute.xlu0 %643
      %645 = vrot.lane.b32.xlu0 %v642, 64
      %v646 = vpop.permute.xlu0 %645
      %647 = vrot.lane.b32.xlu0 %v641, 64
      %v648 = vpop.permute.xlu0 %647
      %vm652 = vcmask 654848
      %653 = vst.msk [vmem:[#allocation5] sm:$0xff] %vm652, %v644
      %654 = vst.msk [vmem:[#allocation5 + $0x18] sm:$0xff] %vm652, %v646
      %vm655 = vcmask 652800
      %656 = vst.msk [vmem:[#allocation5 + $0x30] sm:$0x3f] %vm655, %v648
      %vm658 = vcmask 1044480
      %v659 = vrot.slane %v607, 3
      %v660 = vrot.slane %v608, 3
      %v661 = vsel %vm658, %v659, %v660
      %v662 = vrot.slane %v609, 3
      %v663 = vsel %vm658, %v660, %v662
      %v664 = vrot.slane %v610, 3
      %v665 = vsel %vm658, %v662, %v664
      %666 = vrot.lane.b32.xlu0 %v661, 96
      %v667 = vpop.permute.xlu0 %666
      %668 = vrot.lane.b32.xlu0 %v663, 96
      %v669 = vpop.permute.xlu0 %668
      %670 = vrot.lane.b32.xlu0 %v665, 96
      %v671 = vpop.permute.xlu0 %670
      %vm675 = vcmask 917248
      %676 = vst.msk [vmem:[#allocation5] sm:$0xff] %vm675, %v667
      %677 = vst.msk [vmem:[#allocation5 + $0x18] sm:$0xff] %vm675, %v669
      %vm678 = vcmask 915200
      %679 = vst.msk [vmem:[#allocation5 + $0x30] sm:$0x3f] %vm678, %v671
      %vm680 = vcmask 1043456
      %v681 = vrot.slane %v607, 4
      %v682 = vrot.slane %v608, 4
      %v683 = vsel %vm680, %v681, %v682
      %v684 = vrot.slane %v609, 4
      %v685 = vsel %vm680, %v682, %v684
      %v686 = vrot.slane %v610, 4
      %v687 = vsel %vm680, %v684, %v686
      %691 = vst.msk [vmem:[#allocation5 + $0x8] sm:$0xff] %vm439, %v683
      %692 = vst.msk [vmem:[#allocation5 + $0x20] sm:$0xff] %vm439, %v685
      %693 = vst.msk [vmem:[#allocation5 + $0x38] sm:$0x3f] %vm589, %v687
      %vm694 = vcmask 1042432
      %v695 = vrot.slane %v607, 5
      %v696 = vrot.slane %v608, 5
      %v697 = vsel %vm694, %v695, %v696
      %v698 = vrot.slane %v609, 5
      %v699 = vsel %vm694, %v696, %v698
      %v700 = vrot.slane %v610, 5
      %v701 = vsel %vm694, %v698, %v700
      %702 = vrot.lane.b32.xlu0 %v697, 32
      %v703 = vpop.permute.xlu0 %702
      %704 = vrot.lane.b32.xlu0 %v699, 32
      %v705 = vpop.permute.xlu0 %704
      %706 = vrot.lane.b32.xlu0 %v701, 32
      %v707 = vpop.permute.xlu0 %706
      %711 = vst.msk [vmem:[#allocation5 + $0x8] sm:$0xff] %vm632, %v703
      %712 = vst.msk [vmem:[#allocation5 + $0x20] sm:$0xff] %vm632, %v705
      %713 = vst.msk [vmem:[#allocation5 + $0x38] sm:$0x3f] %vm635, %v707
      %v714 = vrot.slane %v607, 6
      %v715 = vrot.slane %v608, 6
      %v716 = vsel %vm514, %v714, %v715
      %v717 = vrot.slane %v609, 6
      %v718 = vsel %vm514, %v715, %v717
      %v719 = vrot.slane %v610, 6
      %v720 = vsel %vm514, %v717, %v719
      %721 = vrot.lane.b32.xlu0 %v716, 64
      %v722 = vpop.permute.xlu0 %721
      %723 = vrot.lane.b32.xlu0 %v718, 64
      %v724 = vpop.permute.xlu0 %723
      %725 = vrot.lane.b32.xlu0 %v720, 64
      %v726 = vpop.permute.xlu0 %725
      %730 = vst.msk [vmem:[#allocation5 + $0x8] sm:$0xff] %vm652, %v722
      %731 = vst.msk [vmem:[#allocation5 + $0x20] sm:$0xff] %vm652, %v724
      %732 = vst.msk [vmem:[#allocation5 + $0x38] sm:$0x3f] %vm655, %v726
      %vm733 = vcmask 1040384
      %v734 = vrot.slane %v607, 7
      %v735 = vrot.slane %v608, 7
      %v736 = vsel %vm733, %v734, %v735
      %v737 = vrot.slane %v609, 7
      %v738 = vsel %vm733, %v735, %v737
      %v739 = vrot.slane %v610, 7
      %v740 = vsel %vm733, %v737, %v739
      %741 = vrot.lane.b32.xlu0 %v736, 96
      %v742 = vpop.permute.xlu0 %741
      %743 = vrot.lane.b32.xlu0 %v738, 96
      %v744 = vpop.permute.xlu0 %743
      %745 = vrot.lane.b32.xlu0 %v740, 96
      %v746 = vpop.permute.xlu0 %745
      %750 = vst.msk [vmem:[#allocation5 + $0x8] sm:$0xff] %vm675, %v742
      %751 = vst.msk [vmem:[#allocation5 + $0x20] sm:$0xff] %vm675, %v744
      %752 = vst.msk [vmem:[#allocation5 + $0x38] sm:$0x3f] %vm678, %v746
      %753 = vst.msk [vmem:[#allocation5 + $0x10] sm:$0xff] %vm439, %v608
      %754 = vst.msk [vmem:[#allocation5 + $0x28] sm:$0xff] %vm439, %v609
      %755 = vst.msk [vmem:[#allocation5 + $0x40] sm:$0x3f] %vm589, %v610
      %v756 = vrot.slane %v610, 1
      %v757 = vsel %vm617, %v621, %v756
      %758 = vrot.lane.b32.xlu0 %v757, 32
      %v759 = vpop.permute.xlu0 %758
      %760 = vrot.lane.b32.xlu0 %v756, 32
      %v761 = vpop.permute.xlu0 %760
      %764 = vst.msk [vmem:[#allocation5 + $0x10] sm:$0xff] %vm632, %v626
      %765 = vst.msk [vmem:[#allocation5 + $0x28] sm:$0xff] %vm632, %v759
      %766 = vst.msk [vmem:[#allocation5 + $0x40] sm:$0x3f] %vm635, %v761
      %s767 = scalar_lea.vmem [#allocation2], 6
      %v768 = vld [vmem:[%s767] ss:$4 sm:$0xff]
      %s769 = scalar_lea.vmem [#allocation2], 38
      %v770 = vld [vmem:[%s769] ss:$4 sm:$0xff]
      %s771 = scalar_lea.vmem [#allocation2], 70
      %v772 = vld [vmem:[%s771] ss:$4 sm:$0xff]
      %s773 = scalar_lea.vmem [#allocation2], 102
      %v774 = vld [vmem:[%s773] ss:$4 sm:$0x7f]
      %s775 = scalar_lea.vmem [#allocation2], 7
      %v776 = vld [vmem:[%s775] ss:$4 sm:$0xff]
      %s777 = scalar_lea.vmem [#allocation2], 39
      %v778 = vld [vmem:[%s777] ss:$4 sm:$0xff]
      %s779 = scalar_lea.vmem [#allocation2], 71
      %v780 = vld [vmem:[%s779] ss:$4 sm:$0xff]
      %s781 = scalar_lea.vmem [#allocation2], 103
      %v782 = vld [vmem:[%s781] ss:$4 sm:$0x7f]
      %v783 = vmax.f32 %v768, %v776
      %v784 = vmax.f32 %v770, %v778
      %v785 = vmax.f32 %v772, %v780
      %v786 = vmax.f32 %v774, %v782
      %790 = vrot.lane.b32.xlu0 %v783, 16
      %v791 = vpop.permute.xlu0 %790
      %792 = vrot.lane.b32.xlu0 %v784, 16
      %v793 = vpop.permute.xlu0 %792
      %794 = vrot.lane.b32.xlu0 %v785, 16
      %v795 = vpop.permute.xlu0 %794
      %vm799 = vcmask 261248
      %800 = vst.msk [vmem:[#allocation5] sm:$0xff] %vm799, %v791
      %801 = vst.msk [vmem:[#allocation5 + $0x18] sm:$0xff] %vm799, %v793
      %vm802 = vcmask 259200
      %803 = vst.msk [vmem:[#allocation5 + $0x30] sm:$0x3f] %vm802, %v795
      %v804 = vrot.slane %v783, 1
      %v805 = vrot.slane %v784, 1
      %v806 = vsel %vm617, %v804, %v805
      %v807 = vrot.slane %v785, 1
      %v808 = vsel %vm617, %v805, %v807
      %809 = vrot.lane.b32.xlu0 %v806, 48
      %v810 = vpop.permute.xlu0 %809
      %811 = vrot.lane.b32.xlu0 %v808, 48
      %v812 = vpop.permute.xlu0 %811
      %813 = vrot.lane.b32.xlu0 %v807, 48
      %v814 = vpop.permute.xlu0 %813
      %vm818 = vcmask 523648
      %819 = vst.msk [vmem:[#allocation5] sm:$0xff] %vm818, %v810
      %820 = vst.msk [vmem:[#allocation5 + $0x18] sm:$0xff] %vm818, %v812
      %vm821 = vcmask 521600
      %822 = vst.msk [vmem:[#allocation5 + $0x30] sm:$0x3f] %vm821, %v814
      %v823 = vrot.slane %v783, 2
      %v824 = vrot.slane %v784, 2
      %v825 = vsel %vm637, %v823, %v824
      %v826 = vrot.slane %v785, 2
      %v827 = vsel %vm637, %v824, %v826
      %828 = vrot.lane.b32.xlu0 %v825, 80
      %v829 = vpop.permute.xlu0 %828
      %830 = vrot.lane.b32.xlu0 %v827, 80
      %v831 = vpop.permute.xlu0 %830
      %832 = vrot.lane.b32.xlu0 %v826, 80
      %v833 = vpop.permute.xlu0 %832
      %vm837 = vcmask 786048
      %838 = vst.msk [vmem:[#allocation5] sm:$0xff] %vm837, %v829
      %839 = vst.msk [vmem:[#allocation5 + $0x18] sm:$0xff] %vm837, %v831
      %vm840 = vcmask 784000
      %841 = vst.msk [vmem:[#allocation5 + $0x30] sm:$0x3f] %vm840, %v833
      %v843 = vrot.slane %v783, 3
      %v844 = vrot.slane %v784, 3
      %v845 = vsel %vm658, %v843, %v844
      %v846 = vrot.slane %v785, 3
      %v847 = vsel %vm658, %v844, %v846
      %v848 = vrot.slane %v786, 3
      %v849 = vsel %vm658, %v846, %v848
      %850 = vrot.lane.b32.xlu0 %v845, 112
      %v851 = vpop.permute.xlu0 %850
      %852 = vrot.lane.b32.xlu0 %v847, 112
      %v853 = vpop.permute.xlu0 %852
      %854 = vrot.lane.b32.xlu0 %v849, 112
      %v855 = vpop.permute.xlu0 %854
      %vm859 = vcmask 1048448
      %860 = vst.msk [vmem:[#allocation5] sm:$0xff] %vm859, %v851
      %861 = vst.msk [vmem:[#allocation5 + $0x18] sm:$0xff] %vm859, %v853
      %vm862 = vcmask 1046400
      %863 = vst.msk [vmem:[#allocation5 + $0x30] sm:$0x3f] %vm862, %v855
      %v864 = vrot.slane %v783, 4
      %v865 = vrot.slane %v784, 4
      %v866 = vsel %vm680, %v864, %v865
      %v867 = vrot.slane %v785, 4
      %v868 = vsel %vm680, %v865, %v867
      %v869 = vrot.slane %v786, 4
      %v870 = vsel %vm680, %v867, %v869
      %871 = vrot.lane.b32.xlu0 %v866, 16
      %v872 = vpop.permute.xlu0 %871
      %873 = vrot.lane.b32.xlu0 %v868, 16
      %v874 = vpop.permute.xlu0 %873
      %875 = vrot.lane.b32.xlu0 %v870, 16
      %v876 = vpop.permute.xlu0 %875
      %880 = vst.msk [vmem:[#allocation5 + $0x8] sm:$0xff] %vm799, %v872
      %881 = vst.msk [vmem:[#allocation5 + $0x20] sm:$0xff] %vm799, %v874
      %882 = vst.msk [vmem:[#allocation5 + $0x38] sm:$0x3f] %vm802, %v876
      %v883 = vrot.slane %v783, 5
      %v884 = vrot.slane %v784, 5
      %v885 = vsel %vm694, %v883, %v884
      %v886 = vrot.slane %v785, 5
      %v887 = vsel %vm694, %v884, %v886
      %v888 = vrot.slane %v786, 5
      %v889 = vsel %vm694, %v886, %v888
      %890 = vrot.lane.b32.xlu0 %v885, 48
      %v891 = vpop.permute.xlu0 %890
      %892 = vrot.lane.b32.xlu0 %v887, 48
      %v893 = vpop.permute.xlu0 %892
      %894 = vrot.lane.b32.xlu0 %v889, 48
      %v895 = vpop.permute.xlu0 %894
      %899 = vst.msk [vmem:[#allocation5 + $0x8] sm:$0xff] %vm818, %v891
      %900 = vst.msk [vmem:[#allocation5 + $0x20] sm:$0xff] %vm818, %v893
      %901 = vst.msk [vmem:[#allocation5 + $0x38] sm:$0x3f] %vm821, %v895
      %v902 = vrot.slane %v783, 6
      %v903 = vrot.slane %v784, 6
      %v904 = vsel %vm514, %v902, %v903
      %v905 = vrot.slane %v785, 6
      %v906 = vsel %vm514, %v903, %v905
      %v907 = vrot.slane %v786, 6
      %v908 = vsel %vm514, %v905, %v907
      %909 = vrot.lane.b32.xlu0 %v904, 80
      %v910 = vpop.permute.xlu0 %909
      %911 = vrot.lane.b32.xlu0 %v906, 80
      %v912 = vpop.permute.xlu0 %911
      %913 = vrot.lane.b32.xlu0 %v908, 80
      %v914 = vpop.permute.xlu0 %913
      %918 = vst.msk [vmem:[#allocation5 + $0x8] sm:$0xff] %vm837, %v910
      %919 = vst.msk [vmem:[#allocation5 + $0x20] sm:$0xff] %vm837, %v912
      %920 = vst.msk [vmem:[#allocation5 + $0x38] sm:$0x3f] %vm840, %v914
      %v921 = vrot.slane %v783, 7
      %v922 = vrot.slane %v784, 7
      %v923 = vsel %vm733, %v921, %v922
      %v924 = vrot.slane %v785, 7
      %v925 = vsel %vm733, %v922, %v924
      %v926 = vrot.slane %v786, 7
      %v927 = vsel %vm733, %v924, %v926
      %928 = vrot.lane.b32.xlu0 %v923, 112
      %v929 = vpop.permute.xlu0 %928
      %930 = vrot.lane.b32.xlu0 %v925, 112
      %v931 = vpop.permute.xlu0 %930
      %932 = vrot.lane.b32.xlu0 %v927, 112
      %v933 = vpop.permute.xlu0 %932
      %937 = vst.msk [vmem:[#allocation5 + $0x8] sm:$0xff] %vm859, %v929
      %938 = vst.msk [vmem:[#allocation5 + $0x20] sm:$0xff] %vm859, %v931
      %939 = vst.msk [vmem:[#allocation5 + $0x38] sm:$0x3f] %vm862, %v933
      %940 = vrot.lane.b32.xlu0 %v786, 16
      %v941 = vpop.permute.xlu0 %940
      %943 = vst.msk [vmem:[#allocation5 + $0x10] sm:$0xff] %vm799, %v793
      %944 = vst.msk [vmem:[#allocation5 + $0x28] sm:$0xff] %vm799, %v795
      %945 = vst.msk [vmem:[#allocation5 + $0x40] sm:$0x3f] %vm802, %v941
      %v946 = vrot.slane %v786, 1
      %v947 = vsel %vm617, %v807, %v946
      %948 = vrot.lane.b32.xlu0 %v947, 48
      %v949 = vpop.permute.xlu0 %948
      %950 = vrot.lane.b32.xlu0 %v946, 48
      %v951 = vpop.permute.xlu0 %950
      %954 = vst.msk [vmem:[#allocation5 + $0x10] sm:$0xff] %vm818, %v812
      %955 = vst.msk [vmem:[#allocation5 + $0x28] sm:$0xff] %vm818, %v949
      %956 = vst.msk [vmem:[#allocation5 + $0x40] sm:$0x3f] %vm821, %v951
      %v957 = vld [vmem:[#allocation5] sm:$0xff]
      %v958 = vld [vmem:[#allocation5 + $0x8] sm:$0xff]
      %v959 = vld [vmem:[#allocation5 + $0x10] sm:$0xff]
      %v960 = vld [vmem:[#allocation5 + $0x18] sm:$0xff]
      %v961 = vld [vmem:[#allocation5 + $0x20] sm:$0xff]
      %v962 = vld [vmem:[#allocation5 + $0x28] sm:$0xff]
      %v963 = vld [vmem:[#allocation5 + $0x30] sm:$0x3f]
      %v964 = vld [vmem:[#allocation5 + $0x38] sm:$0x3f]
      %v965 = vld [vmem:[#allocation5 + $0x40] sm:$0x3f]
      %v966 = vld [vmem:[%s3] sm:$0xff]
      %v967 = vld [vmem:[%s3 + $0x8] sm:$0xff]
      %v968 = vld [vmem:[%s3 + $0x10] sm:$0xff]
      %v969 = vld [vmem:[%s3 + $0x18] sm:$0xff]
      %v970 = vld [vmem:[%s3 + $0x20] sm:$0xff]
      %v971 = vld [vmem:[%s3 + $0x28] sm:$0xff]
      %v972 = vld [vmem:[%s3 + $0x30] sm:$0xff]
      %v973 = vld [vmem:[%s3 + $0x38] sm:$0xff]
      %v974 = vld [vmem:[%s3 + $0x40] sm:$0xff]
      %v975 = vld [vmem:[%s3 + $0x48] sm:$0xff]
      %v976 = vld [vmem:[%s3 + $0x50] sm:$0xff]
      %v977 = vld [vmem:[%s3 + $0x58] sm:$0xff]
      %v978 = vld [vmem:[%s3 + $0x60] sm:$0xff]
      %v979 = vld [vmem:[%s3 + $0x68] sm:$0xff]
      %v980 = vld [vmem:[%s3 + $0x70] sm:$0xff]
      %v981 = vld [vmem:[%s3 + $0x78] sm:$0xff]
      %v982 = vld [vmem:[%s3 + $0x80] sm:$0xff]
      %v983 = vld [vmem:[%s3 + $0x88] sm:$0xff]
      %v984 = vld [vmem:[%s3 + $0x90] sm:$0xff]
      %v985 = vld [vmem:[%s3 + $0x98] sm:$0xff]
      %v986 = vld [vmem:[%s3 + $0xa0] sm:$0xff]
      %v987 = vld [vmem:[%s3 + $0xa8] sm:$0xff]
      %v988 = vld [vmem:[%s3 + $0xb0] sm:$0xff]
      %v989 = vld [vmem:[%s3 + $0xb8] sm:$0xff]
      %v990 = vld [vmem:[%s3 + $0xc0] sm:$0xff]
      %v991 = vld [vmem:[%s3 + $0xc8] sm:$0xff]
      %v992 = vld [vmem:[%s3 + $0xd0] sm:$0xff]
      %v993 = vld [vmem:[%s3 + $0xd8] sm:$0xff]
      %v994 = vld [vmem:[%s3 + $0xe0] sm:$0xff]
      %v995 = vld [vmem:[%s3 + $0xe8] sm:$0xff]
      %v996 = vld [vmem:[%s3 + $0xf0] sm:$0xff]
      %v997 = vld [vmem:[%s3 + $0xf8] sm:$0xff]
      %v998 = vld [vmem:[%s3 + $0x100] sm:$0xff]
      %v999 = vld [vmem:[%s3 + $0x108] sm:$0xff]
      %v1000 = vld [vmem:[%s3 + $0x110] sm:$0xff]
      %v1001 = vld [vmem:[%s3 + $0x118] sm:$0xff]
      %v1002 = vld [vmem:[%s3 + $0x120] sm:$0xff]
      %v1003 = vld [vmem:[%s3 + $0x128] sm:$0xff]
      %v1004 = vld [vmem:[%s3 + $0x130] sm:$0xff]
      %v1005 = vld [vmem:[%s3 + $0x138] sm:$0xff]
      %v1006 = vld [vmem:[%s4] sm:$0x1]
      %v1008 = vperm.slane %v1006, 0
      %v1011 = vsel %vm454, %v959, 0
      %v1014 = vsel %vm454, %v962, 0
      %v1017 = vsel %vm454, %v965, 0
      %1019 = vmatpush.msra.mxu0 %v981
      %1020 = vmatpush.msra.mxu0 %v980
      %1021 = vmatpush.msra.mxu0 %v979
      %1022 = vmatpush.msra.mxu0 %v978
      %1023 = vmatpush.msra.mxu0 %v977
      %1024 = vmatpush.msra.mxu0 %v976
      %1025 = vmatpush.msra.mxu0 %v975
      %1026 = vmatpush.msra.mxu0 %v974
      %1027 = vmatpush.msra.mxu0 %v973
      %1028 = vmatpush.msra.mxu0 %v972
      %1029 = vmatpush.msra.mxu0 %v971
      %1030 = vmatpush.msra.mxu0 %v970
      %1031 = vmatpush.msra.mxu0 %v969
      %1032 = vmatpush.msra.mxu0 %v968
      %1033 = vmatpush.msra.mxu0 %v967
      %1034 = vmatpush.msra.mxu0 %v966
      %1035 = vmatmul.f32.gmra.mxu0 %v957
      %v1036 = vpop.f32.mrf.mxu0
      %v1037 = vadd.f32 %v1008, %v1036
      %1038 = vmatmul.f32.gmra.mxu0 %v960
      %v1039 = vpop.f32.mrf.mxu0
      %v1040 = vadd.f32 %v1008, %v1039
      %1041 = vmatmul.f32.gmra.mxu0 %v963
      %v1042 = vpop.f32.mrf.mxu0
      %v1043 = vadd.f32 %v1008, %v1042
      %1044 = vdwg.mxu0
      %1045 = vmatpush.msra.mxu0 %v997
      %1046 = vmatpush.msra.mxu0 %v996
      %1047 = vmatpush.msra.mxu0 %v995
      %1048 = vmatpush.msra.mxu0 %v994
      %1049 = vmatpush.msra.mxu0 %v993
      %1050 = vmatpush.msra.mxu0 %v992
      %1051 = vmatpush.msra.mxu0 %v991
      %1052 = vmatpush.msra.mxu0 %v990
      %1053 = vmatpush.msra.mxu0 %v989
      %1054 = vmatpush.msra.mxu0 %v988
      %1055 = vmatpush.msra.mxu0 %v987
      %1056 = vmatpush.msra.mxu0 %v986
      %1057 = vmatpush.msra.mxu0 %v985
      %1058 = vmatpush.msra.mxu0 %v984
      %1059 = vmatpush.msra.mxu0 %v983
      %1060 = vmatpush.msra.mxu0 %v982
      %1061 = vmatmul.f32.gmra.mxu0 %v958
      %v1062 = vpop.f32.mrf.mxu0
      %v1063 = vadd.f32 %v1037, %v1062
      %1064 = vmatmul.f32.gmra.mxu0 %v961
      %v1065 = vpop.f32.mrf.mxu0
      %v1066 = vadd.f32 %v1040, %v1065
      %1067 = vmatmul.f32.gmra.mxu0 %v964
      %v1068 = vpop.f32.mrf.mxu0
      %v1069 = vadd.f32 %v1043, %v1068
      %1070 = vdwg.mxu0
      %1071 = vmatpush.msra.mxu0 0.0
      %1072 = vmatpush.msra.mxu0 0.0
      %1073 = vmatpush.msra.mxu0 0.0
      %1074 = vmatpush.msra.mxu0 0.0
      %1075 = vmatpush.msra.mxu0 0.0
      %1076 = vmatpush.msra.mxu0 0.0
      %1077 = vmatpush.msra.mxu0 0.0
      %1078 = vmatpush.msra.mxu0 0.0
      %1079 = vmatpush.msra.mxu0 %v1005
      %1080 = vmatpush.msra.mxu0 %v1004
      %1081 = vmatpush.msra.mxu0 %v1003
      %1082 = vmatpush.msra.mxu0 %v1002
      %1083 = vmatpush.msra.mxu0 %v1001
      %1084 = vmatpush.msra.mxu0 %v1000
      %1085 = vmatpush.msra.mxu0 %v999
      %1086 = vmatpush.msra.mxu0 %v998
      %1087 = vmatmul.f32.gmra.mxu0 %v1011
      %v1088 = vpop.f32.mrf.mxu0
      %v1089 = vadd.f32 %v1063, %v1088
      %1090 = vmatmul.f32.gmra.mxu0 %v1014
      %v1091 = vpop.f32.mrf.mxu0
      %v1092 = vadd.f32 %v1066, %v1091
      %1093 = vmatmul.f32.gmra.mxu0 %v1017
      %v1094 = vpop.f32.mrf.mxu0
      %v1095 = vadd.f32 %v1069, %v1094
      %1096 = vdwg.mxu0
      %v1097 = vmax.f32 %v1089, 0.0
      %v1098 = vmax.f32 %v1092, 0.0
      %v1099 = vmax.f32 %v1095, 0.0
      %1100 = vst.msk [vmem:[#allocation3 + $0x10] sm:$0xff] %vm448, %v1097
      %1101 = vst.msk [vmem:[#allocation3 + $0x18] sm:$0xff] %vm448, %v1098
      %vm1102 = vcmask 259072
      %1103 = vst.msk [vmem:[#allocation3 + $0x20] sm:$0x3f] %vm1102, %v1099
      %s1104 = scalar_lea.vmem [#allocation3], 6
      %v1105 = vld [vmem:[%s1104] ss:$2 sm:$0xff]
      %s1106 = scalar_lea.vmem [#allocation3], 22
      %v1107 = vld [vmem:[%s1106] ss:$2 sm:$0xff]
      %s1108 = scalar_lea.vmem [#allocation3], 38
      %v1109 = vld [vmem:[%s1108] ss:$2 sm:$0x1f]
      %s1110 = scalar_lea.vmem [#allocation3], 7
      %v1111 = vld [vmem:[%s1110] ss:$2 sm:$0xff]
      %s1112 = scalar_lea.vmem [#allocation3], 23
      %v1113 = vld [vmem:[%s1112] ss:$2 sm:$0xff]
      %s1114 = scalar_lea.vmem [#allocation3], 39
      %v1115 = vld [vmem:[%s1114] ss:$2 sm:$0x1f]
      %v1116 = vmax.f32 %v1105, %v1111
      %v1117 = vmax.f32 %v1107, %v1113
      %v1118 = vmax.f32 %v1109, %v1115
      %1119 = vst.msk [vmem:[#allocation6] sm:$0xff] %vm448, %v1116
      %vm1120 = vcmask 257024
      %1121 = vst.msk [vmem:[#allocation6 + $0x18] sm:$0xf] %vm1120, %v1117
      %v1124 = vrot.slane %v1116, 1
      %v1125 = vrot.slane %v1117, 1
      %v1126 = vsel %vm617, %v1124, %v1125
      %1127 = vrot.lane.b32.xlu0 %v1126, 32
      %v1128 = vpop.permute.xlu0 %1127
      %1129 = vrot.lane.b32.xlu0 %v1125, 32
      %v1130 = vpop.permute.xlu0 %1129
      %vm1133 = vcmask 523520
      %1134 = vst.msk [vmem:[#allocation6] sm:$0xff] %vm1133, %v1128
      %vm1135 = vcmask 519424
      %1136 = vst.msk [vmem:[#allocation6 + $0x18] sm:$0xf] %vm1135, %v1130
      %v1137 = vrot.slane %v1116, 2
      %v1138 = vrot.slane %v1117, 2
      %v1139 = vsel %vm637, %v1137, %v1138
      %1140 = vrot.lane.b32.xlu0 %v1139, 64
      %v1141 = vpop.permute.xlu0 %1140
      %1142 = vrot.lane.b32.xlu0 %v1138, 64
      %v1143 = vpop.permute.xlu0 %1142
      %vm1146 = vcmask 785920
      %1147 = vst.msk [vmem:[#allocation6] sm:$0xff] %vm1146, %v1141
      %vm1148 = vcmask 781824
      %1149 = vst.msk [vmem:[#allocation6 + $0x18] sm:$0xf] %vm1148, %v1143
      %v1150 = vrot.slane %v1116, 3
      %v1151 = vrot.slane %v1117, 3
      %v1152 = vsel %vm658, %v1150, %v1151
      %1153 = vrot.lane.b32.xlu0 %v1152, 96
      %v1154 = vpop.permute.xlu0 %1153
      %1155 = vrot.lane.b32.xlu0 %v1151, 96
      %v1156 = vpop.permute.xlu0 %1155
      %vm1159 = vcmask 1048320
      %1160 = vst.msk [vmem:[#allocation6] sm:$0xff] %vm1159, %v1154
      %vm1161 = vcmask 1044224
      %1162 = vst.msk [vmem:[#allocation6 + $0x18] sm:$0xf] %vm1161, %v1156
      %v1163 = vrot.slane %v1116, 4
      %v1164 = vrot.slane %v1117, 4
      %v1165 = vsel %vm680, %v1163, %v1164
      %1168 = vst.msk [vmem:[#allocation6 + $0x8] sm:$0xff] %vm448, %v1165
      %1169 = vst.msk [vmem:[#allocation6 + $0x20] sm:$0xf] %vm1120, %v1164
      %v1171 = vrot.slane %v1116, 5
      %v1172 = vrot.slane %v1117, 5
      %v1173 = vsel %vm694, %v1171, %v1172
      %v1174 = vrot.slane %v1118, 5
      %v1175 = vsel %vm694, %v1172, %v1174
      %1176 = vrot.lane.b32.xlu0 %v1173, 32
      %v1177 = vpop.permute.xlu0 %1176
      %1178 = vrot.lane.b32.xlu0 %v1175, 32
      %v1179 = vpop.permute.xlu0 %1178
      %1182 = vst.msk [vmem:[#allocation6 + $0x8] sm:$0xff] %vm1133, %v1177
      %1183 = vst.msk [vmem:[#allocation6 + $0x20] sm:$0xf] %vm1135, %v1179
      %v1184 = vrot.slane %v1116, 6
      %v1185 = vrot.slane %v1117, 6
      %v1186 = vsel %vm514, %v1184, %v1185
      %v1187 = vrot.slane %v1118, 6
      %v1188 = vsel %vm514, %v1185, %v1187
      %1189 = vrot.lane.b32.xlu0 %v1186, 64
      %v1190 = vpop.permute.xlu0 %1189
      %1191 = vrot.lane.b32.xlu0 %v1188, 64
      %v1192 = vpop.permute.xlu0 %1191
      %1195 = vst.msk [vmem:[#allocation6 + $0x8] sm:$0xff] %vm1146, %v1190
      %1196 = vst.msk [vmem:[#allocation6 + $0x20] sm:$0xf] %vm1148, %v1192
      %v1197 = vrot.slane %v1116, 7
      %v1198 = vrot.slane %v1117, 7
      %v1199 = vsel %vm733, %v1197, %v1198
      %v1200 = vrot.slane %v1118, 7
      %v1201 = vsel %vm733, %v1198, %v1200
      %1202 = vrot.lane.b32.xlu0 %v1199, 96
      %v1203 = vpop.permute.xlu0 %1202
      %1204 = vrot.lane.b32.xlu0 %v1201, 96
      %v1205 = vpop.permute.xlu0 %1204
      %1208 = vst.msk [vmem:[#allocation6 + $0x8] sm:$0xff] %vm1159, %v1203
      %1209 = vst.msk [vmem:[#allocation6 + $0x20] sm:$0xf] %vm1161, %v1205
      %1210 = vst.msk [vmem:[#allocation6 + $0x10] sm:$0xff] %vm448, %v1117
      %1211 = vst.msk [vmem:[#allocation6 + $0x28] sm:$0xf] %vm1120, %v1118
      %v1212 = vrot.slane %v1118, 1
      %v1213 = vsel %vm617, %v1125, %v1212
      %1214 = vrot.lane.b32.xlu0 %v1213, 32
      %v1215 = vpop.permute.xlu0 %1214
      %1216 = vrot.lane.b32.xlu0 %v1212, 32
      %v1217 = vpop.permute.xlu0 %1216
      %1220 = vst.msk [vmem:[#allocation6 + $0x10] sm:$0xff] %vm1133, %v1215
      %1221 = vst.msk [vmem:[#allocation6 + $0x28] sm:$0xf] %vm1135, %v1217
      %v1222 = vld [vmem:[#allocation6] sm:$0xff]
      %v1223 = vld [vmem:[#allocation6 + $0x8] sm:$0xff]
      %v1224 = vld [vmem:[#allocation6 + $0x10] sm:$0xff]
      %v1225 = vld [vmem:[#allocation6 + $0x18] sm:$0xf]
      %v1226 = vld [vmem:[#allocation6 + $0x20] sm:$0xf]
      %v1227 = vld [vmem:[#allocation6 + $0x28] sm:$0xf]
      %v1228 = vld [vmem:[%s5] sm:$0xff]
      %v1229 = vld [vmem:[%s5 + $0x8] sm:$0xff]
      %v1230 = vld [vmem:[%s5 + $0x10] sm:$0xff]
      %v1231 = vld [vmem:[%s5 + $0x18] sm:$0xff]
      %v1232 = vld [vmem:[%s5 + $0x20] sm:$0xff]
      %v1233 = vld [vmem:[%s5 + $0x28] sm:$0xff]
      %v1234 = vld [vmem:[%s5 + $0x30] sm:$0xff]
      %v1235 = vld [vmem:[%s5 + $0x38] sm:$0xff]
      %v1236 = vld [vmem:[%s5 + $0x40] sm:$0xff]
      %v1237 = vld [vmem:[%s5 + $0x48] sm:$0xff]
      %v1238 = vld [vmem:[%s5 + $0x50] sm:$0xff]
      %v1239 = vld [vmem:[%s5 + $0x58] sm:$0xff]
      %v1240 = vld [vmem:[%s5 + $0x60] sm:$0xff]
      %v1241 = vld [vmem:[%s5 + $0x68] sm:$0xff]
      %v1242 = vld [vmem:[%s5 + $0x70] sm:$0xff]
      %v1243 = vld [vmem:[%s5 + $0x78] sm:$0xff]
      %v1244 = vld [vmem:[%s5 + $0x80] sm:$0xff]
      %v1245 = vld [vmem:[%s5 + $0x88] sm:$0xff]
      %v1246 = vld [vmem:[%s5 + $0x90] sm:$0xff]
      %v1247 = vld [vmem:[%s5 + $0x98] sm:$0xff]
      %v1248 = vld [vmem:[%s5 + $0xa0] sm:$0xff]
      %v1249 = vld [vmem:[%s5 + $0xa8] sm:$0xff]
      %v1250 = vld [vmem:[%s5 + $0xb0] sm:$0xff]
      %v1251 = vld [vmem:[%s5 + $0xb8] sm:$0xff]
      %v1252 = vld [vmem:[%s5 + $0xc0] sm:$0xff]
      %v1253 = vld [vmem:[%s5 + $0xc8] sm:$0xff]
      %v1254 = vld [vmem:[%s5 + $0xd0] sm:$0xff]
      %v1255 = vld [vmem:[%s5 + $0xd8] sm:$0xff]
      %v1256 = vld [vmem:[%s5 + $0xe0] sm:$0xff]
      %v1257 = vld [vmem:[%s5 + $0xe8] sm:$0xff]
      %v1258 = vld [vmem:[%s5 + $0xf0] sm:$0xff]
      %v1259 = vld [vmem:[%s5 + $0xf8] sm:$0xff]
      %v1260 = vld [vmem:[%s5 + $0x100] sm:$0xff]
      %v1261 = vld [vmem:[%s5 + $0x108] sm:$0xff]
      %v1262 = vld [vmem:[%s5 + $0x110] sm:$0xff]
      %v1263 = vld [vmem:[%s5 + $0x118] sm:$0xff]
      %v1264 = vld [vmem:[%s5 + $0x120] sm:$0xff]
      %v1265 = vld [vmem:[%s5 + $0x128] sm:$0xff]
      %v1266 = vld [vmem:[%s5 + $0x130] sm:$0xff]
      %v1267 = vld [vmem:[%s5 + $0x138] sm:$0xff]
      %v1268 = vld [vmem:[%s6] sm:$0x1]
      %v1270 = vperm.slane %v1268, 0
      %v1273 = vsel %vm454, %v1224, 0
      %v1276 = vsel %vm454, %v1227, 0
      %1278 = vmatpush.msra.mxu0 %v1243
      %1279 = vmatpush.msra.mxu0 %v1242
      %1280 = vmatpush.msra.mxu0 %v1241
      %1281 = vmatpush.msra.mxu0 %v1240
      %1282 = vmatpush.msra.mxu0 %v1239
      %1283 = vmatpush.msra.mxu0 %v1238
      %1284 = vmatpush.msra.mxu0 %v1237
      %1285 = vmatpush.msra.mxu0 %v1236
      %1286 = vmatpush.msra.mxu0 %v1235
      %1287 = vmatpush.msra.mxu0 %v1234
      %1288 = vmatpush.msra.mxu0 %v1233
      %1289 = vmatpush.msra.mxu0 %v1232
      %1290 = vmatpush.msra.mxu0 %v1231
      %1291 = vmatpush.msra.mxu0 %v1230
      %1292 = vmatpush.msra.mxu0 %v1229
      %1293 = vmatpush.msra.mxu0 %v1228
      %1294 = vmatmul.f32.gmra.mxu0 %v1222
      %v1295 = vpop.f32.mrf.mxu0
      %v1296 = vadd.f32 %v1270, %v1295
      %1297 = vmatmul.f32.gmra.mxu0 %v1225
      %v1298 = vpop.f32.mrf.mxu0
      %v1299 = vadd.f32 %v1270, %v1298
      %1300 = vdwg.mxu0
      %1301 = vmatpush.msra.mxu0 %v1259
      %1302 = vmatpush.msra.mxu0 %v1258
      %1303 = vmatpush.msra.mxu0 %v1257
      %1304 = vmatpush.msra.mxu0 %v1256
      %1305 = vmatpush.msra.mxu0 %v1255
      %1306 = vmatpush.msra.mxu0 %v1254
      %1307 = vmatpush.msra.mxu0 %v1253
      %1308 = vmatpush.msra.mxu0 %v1252
      %1309 = vmatpush.msra.mxu0 %v1251
      %1310 = vmatpush.msra.mxu0 %v1250
      %1311 = vmatpush.msra.mxu0 %v1249
      %1312 = vmatpush.msra.mxu0 %v1248
      %1313 = vmatpush.msra.mxu0 %v1247
      %1314 = vmatpush.msra.mxu0 %v1246
      %1315 = vmatpush.msra.mxu0 %v1245
      %1316 = vmatpush.msra.mxu0 %v1244
      %1317 = vmatmul.f32.gmra.mxu0 %v1223
      %v1318 = vpop.f32.mrf.mxu0
      %v1319 = vadd.f32 %v1296, %v1318
      %1320 = vmatmul.f32.gmra.mxu0 %v1226
      %v1321 = vpop.f32.mrf.mxu0
      %v1322 = vadd.f32 %v1299, %v1321
      %1323 = vdwg.mxu0
      %1324 = vmatpush.msra.mxu0 0.0
      %1325 = vmatpush.msra.mxu0 0.0
      %1326 = vmatpush.msra.mxu0 0.0
      %1327 = vmatpush.msra.mxu0 0.0
      %1328 = vmatpush.msra.mxu0 0.0
      %1329 = vmatpush.msra.mxu0 0.0
      %1330 = vmatpush.msra.mxu0 0.0
      %1331 = vmatpush.msra.mxu0 0.0
      %1332 = vmatpush.msra.mxu0 %v1267
      %1333 = vmatpush.msra.mxu0 %v1266
      %1334 = vmatpush.msra.mxu0 %v1265
      %1335 = vmatpush.msra.mxu0 %v1264
      %1336 = vmatpush.msra.mxu0 %v1263
      %1337 = vmatpush.msra.mxu0 %v1262
      %1338 = vmatpush.msra.mxu0 %v1261
      %1339 = vmatpush.msra.mxu0 %v1260
      %1340 = vmatmul.f32.gmra.mxu0 %v1273
      %v1341 = vpop.f32.mrf.mxu0
      %v1342 = vadd.f32 %v1319, %v1341
      %1343 = vmatmul.f32.gmra.mxu0 %v1276
      %v1344 = vpop.f32.mrf.mxu0
      %v1345 = vadd.f32 %v1322, %v1344
      %1346 = vdwg.mxu0
      %v1347 = vmax.f32 %v1342, 0.0
      %v1348 = vmax.f32 %v1345, 0.0
      %1349 = vst.msk [vmem:[#allocation4 + $0x8] sm:$0xff] %vm454, %v1347
      %1350 = vst.msk [vmem:[#allocation4 + $0x10] sm:$0xf] %vm456, %v1348
      %s1351 = scalar_lea.vmem [#allocation4], 4
      %v1352 = vld [vmem:[%s1351] ss:$2 sm:$0xff]
      %s1353 = scalar_lea.vmem [#allocation4], 20
      %v1354 = vld [vmem:[%s1353] ss:$2 sm:$0x3]
      %s1355 = scalar_lea.vmem [#allocation4], 5
      %v1356 = vld [vmem:[%s1355] ss:$2 sm:$0xff]
      %s1357 = scalar_lea.vmem [#allocation4], 21
      %v1358 = vld [vmem:[%s1357] ss:$2 sm:$0x3]
      %v1359 = vmax.f32 %v1352, %v1356
      %v1360 = vmax.f32 %v1354, %v1358
      %vm1361 = vcmask 521216
      %1362 = vst.msk [vmem:[#allocation7] sm:$0x3f] %vm1361, %v1359
      %v1364 = vrot.slane %v1359, 1
      %1365 = vrot.lane.b32.xlu0 %v1364, 64
      %v1366 = vpop.permute.xlu0 %1365
      %vm1368 = vcmask 1046016
      %1369 = vst.msk [vmem:[#allocation7] sm:$0x3f] %vm1368, %v1366
      %v1370 = vrot.slane %v1359, 2
      %1372 = vst.msk [vmem:[#allocation7 + $0x8] sm:$0x3f] %vm1361, %v1370
      %v1374 = vrot.slane %v1359, 3
      %v1375 = vrot.slane %v1360, 3
      %v1376 = vsel %vm658, %v1374, %v1375
      %1377 = vrot.lane.b32.xlu0 %v1376, 64
      %v1378 = vpop.permute.xlu0 %1377
      %1380 = vst.msk [vmem:[#allocation7 + $0x8] sm:$0x3f] %vm1368, %v1378
      %v1381 = vrot.slane %v1359, 4
      %v1382 = vrot.slane %v1360, 4
      %v1383 = vsel %vm680, %v1381, %v1382
      %1385 = vst.msk [vmem:[#allocation7 + $0x10] sm:$0x3f] %vm1361, %v1383
      %v1386 = vld [vmem:[#allocation7] sm:$0x3f]
      %v1387 = vld [vmem:[#allocation7 + $0x8] sm:$0x3f]
      %v1388 = vld [vmem:[#allocation7 + $0x10] sm:$0x3f]
      %v1389 = vld [vmem:[%s7] sm:$0xff]
      %v1390 = vld [vmem:[%s7 + $0x8] sm:$0xff]
      %v1391 = vld [vmem:[%s7 + $0x10] sm:$0xff]
      %v1392 = vld [vmem:[%s7 + $0x18] sm:$0xff]
      %v1393 = vld [vmem:[%s7 + $0x20] sm:$0xff]
      %v1394 = vld [vmem:[%s7 + $0x28] sm:$0xff]
      %v1395 = vld [vmem:[%s7 + $0x30] sm:$0xff]
      %v1396 = vld [vmem:[%s7 + $0x38] sm:$0xff]
      %v1397 = vld [vmem:[%s7 + $0x40] sm:$0xff]
      %v1398 = vld [vmem:[%s7 + $0x48] sm:$0xff]
      %v1399 = vld [vmem:[%s7 + $0x50] sm:$0xff]
      %v1400 = vld [vmem:[%s7 + $0x58] sm:$0xff]
      %v1401 = vld [vmem:[%s7 + $0x60] sm:$0xff]
      %v1402 = vld [vmem:[%s7 + $0x68] sm:$0xff]
      %v1403 = vld [vmem:[%s7 + $0x70] sm:$0xff]
      %v1404 = vld [vmem:[%s7 + $0x78] sm:$0xff]
      %v1405 = vld [vmem:[%s7 + $0x80] sm:$0xff]
      %v1406 = vld [vmem:[%s7 + $0x88] sm:$0xff]
      %v1407 = vld [vmem:[%s7 + $0x90] sm:$0xff]
      %v1408 = vld [vmem:[%s7 + $0x98] sm:$0xff]
      %v1409 = vld [vmem:[%s7 + $0xa0] sm:$0xff]
      %v1410 = vld [vmem:[%s7 + $0xa8] sm:$0xff]
      %v1411 = vld [vmem:[%s7 + $0xb0] sm:$0xff]
      %v1412 = vld [vmem:[%s7 + $0xb8] sm:$0xff]
      %v1413 = vld [vmem:[%s7 + $0xc0] sm:$0xff]
      %v1414 = vld [vmem:[%s7 + $0xc8] sm:$0xff]
      %v1415 = vld [vmem:[%s7 + $0xd0] sm:$0xff]
      %v1416 = vld [vmem:[%s7 + $0xd8] sm:$0xff]
      %v1417 = vld [vmem:[%s7 + $0xe0] sm:$0xff]
      %v1418 = vld [vmem:[%s7 + $0xe8] sm:$0xff]
      %v1419 = vld [vmem:[%s7 + $0xf0] sm:$0xff]
      %v1420 = vld [vmem:[%s7 + $0xf8] sm:$0xff]
      %v1421 = vld [vmem:[%s7 + $0x100] sm:$0xff]
      %v1422 = vld [vmem:[%s7 + $0x108] sm:$0xff]
      %v1423 = vld [vmem:[%s7 + $0x110] sm:$0xff]
      %v1424 = vld [vmem:[%s7 + $0x118] sm:$0xff]
      %v1425 = vld [vmem:[%s7 + $0x120] sm:$0xff]
      %v1426 = vld [vmem:[%s7 + $0x128] sm:$0xff]
      %v1427 = vld [vmem:[%s7 + $0x130] sm:$0xff]
      %v1428 = vld [vmem:[%s7 + $0x138] sm:$0xff]
      %v1429 = vld [vmem:[%s8] sm:$0x1]
      %v1431 = vperm.slane %v1429, 0
      %v1434 = vsel %vm454, %v1388, 0
      %1436 = vmatpush.msra.mxu0 %v1404
      %1437 = vmatpush.msra.mxu0 %v1403
      %1438 = vmatpush.msra.mxu0 %v1402
      %1439 = vmatpush.msra.mxu0 %v1401
      %1440 = vmatpush.msra.mxu0 %v1400
      %1441 = vmatpush.msra.mxu0 %v1399
      %1442 = vmatpush.msra.mxu0 %v1398
      %1443 = vmatpush.msra.mxu0 %v1397
      %1444 = vmatpush.msra.mxu0 %v1396
      %1445 = vmatpush.msra.mxu0 %v1395
      %1446 = vmatpush.msra.mxu0 %v1394
      %1447 = vmatpush.msra.mxu0 %v1393
      %1448 = vmatpush.msra.mxu0 %v1392
      %1449 = vmatpush.msra.mxu0 %v1391
      %1450 = vmatpush.msra.mxu0 %v1390
      %1451 = vmatpush.msra.mxu0 %v1389
      %1452 = vmatmul.f32.gmra.mxu0 %v1386
      %v1453 = vpop.f32.mrf.mxu0
      %v1454 = vadd.f32 %v1431, %v1453
      %1455 = vdwg.mxu0
      %1456 = vmatpush.msra.mxu0 %v1420
      %1457 = vmatpush.msra.mxu0 %v1419
      %1458 = vmatpush.msra.mxu0 %v1418
      %1459 = vmatpush.msra.mxu0 %v1417
      %1460 = vmatpush.msra.mxu0 %v1416
      %1461 = vmatpush.msra.mxu0 %v1415
      %1462 = vmatpush.msra.mxu0 %v1414
      %1463 = vmatpush.msra.mxu0 %v1413
      %1464 = vmatpush.msra.mxu0 %v1412
      %1465 = vmatpush.msra.mxu0 %v1411
      %1466 = vmatpush.msra.mxu0 %v1410
      %1467 = vmatpush.msra.mxu0 %v1409
      %1468 = vmatpush.msra.mxu0 %v1408
      %1469 = vmatpush.msra.mxu0 %v1407
      %1470 = vmatpush.msra.mxu0 %v1406
      %1471 = vmatpush.msra.mxu0 %v1405
      %1472 = vmatmul.f32.gmra.mxu0 %v1387
      %v1473 = vpop.f32.mrf.mxu0
      %v1474 = vadd.f32 %v1454, %v1473
      %1475 = vdwg.mxu0
      %1476 = vmatpush.msra.mxu0 0.0
      %1477 = vmatpush.msra.mxu0 0.0
      %1478 = vmatpush.msra.mxu0 0.0
      %1479 = vmatpush.msra.mxu0 0.0
      %1480 = vmatpush.msra.mxu0 0.0
      %1481 = vmatpush.msra.mxu0 0.0
      %1482 = vmatpush.msra.mxu0 0.0
      %1483 = vmatpush.msra.mxu0 0.0
      %1484 = vmatpush.msra.mxu0 %v1428
      %1485 = vmatpush.msra.mxu0 %v1427
      %1486 = vmatpush.msra.mxu0 %v1426
      %1487 = vmatpush.msra.mxu0 %v1425
      %1488 = vmatpush.msra.mxu0 %v1424
      %1489 = vmatpush.msra.mxu0 %v1423
      %1490 = vmatpush.msra.mxu0 %v1422
      %1491 = vmatpush.msra.mxu0 %v1421
      %1492 = vmatmul.f32.gmra.mxu0 %v1434
      %v1493 = vpop.f32.mrf.mxu0
      %v1494 = vadd.f32 %v1474, %v1493
      %1495 = vdwg.mxu0
      %v1496 = vmax.f32 %v1494, 0.0
      %v1497 = vsel %vm637, %v1496, 0.0
      %v1498 = vrot.slane %v1497, 4
      %v1499 = vadd.f32 %v1497, %v1498
      %v1500 = vrot.slane %v1499, 2
      %v1501 = vadd.f32 %v1499, %v1500
      %v1502 = vrot.slane %v1501, 1
      %v1503 = vadd.f32 %v1501, %v1502
      %v1504 = vrcp.pop 6.0
      %v1505 = vmul.f32 6.0, %v1504
      %v1506 = vsub.f32 1.0, %v1505
      %v1507 = vmul.f32 %v1504, %v1506
      %v1508 = vadd.f32 %v1504, %v1507
      %vm1509 = vweird.f32 %v1504
      %v1510 = vsel %vm1509, %v1504, %v1508
      %v1511 = vmul.f32 %v1503, %v1510
      %v1512 = vld [vmem:[%s9] sm:$0xff]
      %v1513 = vld [vmem:[%s9 + $0x8] sm:$0xff]
      %v1514 = vld [vmem:[%s9 + $0x10] sm:$0xff]
      %v1515 = vld [vmem:[%s9 + $0x18] sm:$0xff]
      %v1516 = vld [vmem:[%s9 + $0x20] sm:$0xff]
      %v1517 = vld [vmem:[%s9 + $0x28] sm:$0xff]
      %v1518 = vld [vmem:[%s9 + $0x30] sm:$0xff]
      %v1519 = vld [vmem:[%s9 + $0x38] sm:$0xff]
      %v1520 = vld [vmem:[%s9 + $0x40] sm:$0xff]
      %v1521 = vld [vmem:[%s9 + $0x48] sm:$0xff]
      %v1522 = vld [vmem:[%s9 + $0x50] sm:$0xff]
      %v1523 = vld [vmem:[%s9 + $0x58] sm:$0xff]
      %v1524 = vld [vmem:[%s9 + $0x60] sm:$0xff]
      %v1525 = vld [vmem:[%s9 + $0x68] sm:$0xff]
      %v1526 = vld [vmem:[%s9 + $0x70] sm:$0xff]
      %v1527 = vld [vmem:[%s9 + $0x78] sm:$0xff]
      %v1528 = vld [vmem:[%s10] sm:$0x1]
      %1529 = vmatpush.msra.mxu0 %v1527
      %1530 = vmatpush.msra.mxu0 %v1526
      %1531 = vmatpush.msra.mxu0 %v1525
      %1532 = vmatpush.msra.mxu0 %v1524
      %1533 = vmatpush.msra.mxu0 %v1523
      %1534 = vmatpush.msra.mxu0 %v1522
      %1535 = vmatpush.msra.mxu0 %v1521
      %1536 = vmatpush.msra.mxu0 %v1520
      %1537 = vmatpush.msra.mxu0 %v1519
      %1538 = vmatpush.msra.mxu0 %v1518
      %1539 = vmatpush.msra.mxu0 %v1517
      %1540 = vmatpush.msra.mxu0 %v1516
      %1541 = vmatpush.msra.mxu0 %v1515
      %1542 = vmatpush.msra.mxu0 %v1514
      %1543 = vmatpush.msra.mxu0 %v1513
      %1544 = vmatpush.msra.mxu0 %v1512
      %1545 = vmatmul.f32.gmra.mxu0 %v1511
      %v1546 = vpop.f32.mrf.mxu0
      %v1547 = vadd.f32 %v1528, %v1546
      %1548 = vdwg.mxu0
      %v1549 = vmax.f32 %v1547, 0.0
      %v1550 = vld [vmem:[%s11] sm:$0x1]
      %v1551 = vmul.f32 %v1549, %v1550
      %vm1552 = vcmask 516096
      %v1553 = vsel %vm1552, %v1551, 0.0
      %1554 = vadd.xlane.f32.xlu0 %v1553
      %v1555 = vpop.xlane.xlu0 %1554
      %v1556 = vld [vmem:[#allocation8] sm:$0x1]
      %v1557 = vadd.f32 %v1555, %v1556
      %v1558 = vsub.f32 0.0, %v1557
      %v1559 = vmul.f32 %v1558, 1.442695
      %v1560 = vpow.pop %v1559
      %v1561 = vadd.f32 %v1560, 1.0
      %v1562 = vrcp.pop %v1561
      %v1563 = vmul.f32 %v1561, %v1562
      %v1564 = vsub.f32 1.0, %v1563
      %v1565 = vmul.f32 %v1562, %v1564
      %v1566 = vadd.f32 %v1562, %v1565
      %vm1567 = vweird.f32 %v1561
      %vm1568 = vweird.f32 %v1562
      %vm1569 = vmor %vm1567, %vm1568
      %v1570 = vsel %vm1569, %v1562, %v1566
      %v1571 = vand.u32 2147483647, %v1561
      %vm1572 = vcmp.eq.f32.partialorder %v1571, 8.507059e+37
      %v1573 = vand.u32 %v1561, 2147483648
      %v1574 = vor.u32 1.1754944e-38, %v1573
      %v1575 = vsel %vm1572, %v1574, %v1570
      %v1576 = vmul.f32 1.0, %v1575
      %1578 = vset.pattern.permute.xlu0 0
      %1579 = vperm.xlu0 %1578, %v1576
      %v1580 = vpop.permute.xlu0 %1579
      %1582 = vst [vmem:[%s438] sm:$0x1] %v1580
      %p1583 = scmp.lt.s32.totalorder %s26, 1
      %s1584 = scalar_select %p1583, %s26, 1
      %s1585 = scalar_lea.vmem %s13, %s1584
      // Predicated region
      $region73: #{cnn_forward_pallas.1} parent=71 // pred_check
        %p1586 = pneg %p322
      $region74: #{cnn_forward_pallas.1} parent=71 // pred_check_branch
        %1588 = sbr.rel (%p1586) target = $region76
      $region75: #{cnn_forward_pallas.1} parent=71 // pred_region
        _
      $region76: #{cnn_forward_pallas.1} parent=71 // pred_fallthru
        _
    $region72: #{cnn_forward_pallas.1} parent=5 // pred_fallthru
      _
    %p1589 = scmp.le.s32.totalorder 2, %s21
    // Predicated region
    $region77: #{cnn_forward_pallas.1} parent=5 // pred_check
      %p1590 = pneg %p1589
    $region78: #{cnn_forward_pallas.1} parent=5 // pred_check_branch
      %1592 = sbr.rel (%p1590) target = $region80
    $region79: #{cnn_forward_pallas.1} parent=5 // pred_region
      %s1593 = ssub.s32 %s21, 2
      // Predicated region
      $region81: #{cnn_forward_pallas.1} parent=79 // pred_check
        %p1594 = pneg %p328
      $region82: #{cnn_forward_pallas.1} parent=79 // pred_check_branch
        %1596 = sbr.rel (%p1594) target = $region84
      $region83: #{cnn_forward_pallas.1} parent=79 // pred_region
        %p1597 = scmp.lt.s32.totalorder %s27, 1
        %s1598 = scalar_select %p1597, %s27, 1
        %s1599 = scalar_lea.vmem %s13, %s1598
      $region84: #{cnn_forward_pallas.1} parent=79 // pred_fallthru
        _
    $region80: #{cnn_forward_pallas.1} parent=5 // pred_fallthru
      _
  $region6: #{cnn_forward_pallas.1} parent=0 // loop_footer
    %s25 = sadd.s32 1, %s21
  $region7: #{cnn_forward_pallas.1} parent=0 // loop_footer_branch
    %20 = sbr.rel target = $region3
  $region8: #{cnn_forward_pallas.1} parent=0 // loop_exit
    _

</llo_original>
